<compile_context>
chip_gen: v5e
topology: v5e:2x2
jax: 0.10.0
libtpu: 0.0.40
codegen_flags: <defaults>
</compile_context>

<pallas_src>
import functools

import jax
import jax.numpy as jnp
import numpy as np
from jax.experimental import pallas as pl
from jax.experimental.pallas import tpu as pltpu

H = 80             # LSTM hidden size
HP = 128           # lane-padded hidden size (each gate owns its own 128-lane block)
NG = 4             # LSTM gates, PyTorch order: i, f, g, o
GHP = NG * HP      # packed gate width (512)
CONV_SPECS = (("c1", 15), ("c2", 10), ("c3", 8), ("c4", 5))
CONV_PAD = 8
# sigmoid(x) = 0.5 * tanh(x/2) + 0.5 : i/f/o gate weights/biases are pre-scaled by 0.5
# host-side so a single tanh covers all four gates; the g gate keeps scale 1.
GATE_PRESCALE = np.array([0.5, 0.5, 1.0, 0.5], np.float32)


def _stage_lengths(seq_len):
    """Per conv/pool stage: (input_length, pooled_length)."""
    lens = []
    cur = seq_len
    for _, k in CONV_SPECS:
        lout = cur + 2 * CONV_PAD - k + 1
        pooled = lout // 2
        lens.append((cur, pooled))
        cur = pooled
    return lens


def _padded_width(seq_len):
    """Lane width WP (multiple of 128) that holds every stage's sequence."""
    lens = _stage_lengths(seq_len)
    need = max([seq_len] + [p for _, p in lens])
    return int(max(128, ((need + 127) // 128) * 128))


# ------------------------------- Pallas kernel ------------------------------- #

def ppi_kernel(t_seq,
               scal_ref,    # SMEM (5,)             : conv1..4 bias, fc2 bias
               x_ref,       # VMEM (B, WP) f32      : input, zero padded to WP lanes
               conv_ref,    # VMEM (4, WP, 2WP) bf16: folded Toeplitz, [even | odd] halves
               whh_ref,     # VMEM (HP, 4*HP) bf16  : packed forward recurrent weights
               lsm_ref,     # VMEM (4, 4*HP) f32    : rows = wih_f, b_f, wih_b, b_b
               fc1w_ref,    # VMEM (2*HP, 128) bf16 : fused fc1 weight [fwd; bwd] rows
               fcs_ref,     # VMEM (2, 128) f32     : rows = fc1 bias, fc2 weight (0-padded)
               out_ref,     # VMEM (B, 1) f32
               xwb_ref):    # VMEM scratch (B, t_seq, 4*HP) f32 : staged input projection
    x = x_ref[...]
    B, WP = x.shape

    # ---- conv/relu/pool stages: one bf16 MXU matmul each ---------------------- #
    # Columns >= the valid length hold relu(bias) garbage, but the next stage's
    # folded matrix has zero rows there, so they never contaminate the result.
    z = x
    for s in range(4):
        y = jnp.dot(z.astype(jnp.bfloat16), conv_ref[s],
                    preferred_element_type=jnp.float32) + scal_ref[s]
        y = jnp.maximum(y, 0.0)                        # ReLU
        z = jnp.maximum(y[:, :WP], y[:, WP:])          # MaxPool1d(2): vreg-aligned halves
    # z: (B, WP) f32; valid sequence lives in columns [0:t_seq)

    # ---- input projection: one batched broadcast, staged in VMEM -------------- #
    wih_f = lsm_ref[0:1, :].reshape(1, 1, GHP)
    b_f = lsm_ref[1:2, :].reshape(1, 1, GHP)
    xwb_ref[...] = z[:, :t_seq][:, :, None] * wih_f + b_f

    # ---- forward LSTM (serial recurrence, one bf16 matmul + 2 tanh per step) -- #
    h = jnp.zeros((B, HP), jnp.float32)
    c = jnp.zeros((B, HP), jnp.float32)
    for t in range(t_seq):
        xwb_t = xwb_ref[:, t:t + 1, :].reshape(B, GHP)
        g = jnp.dot(h.astype(jnp.bfloat16), whh_ref[...],
                    preferred_element_type=jnp.float32) + xwb_t
        tg = jnp.tanh(g)                               # single EUP pass over all 4 gates
        i_g = 0.5 * tg[:, 0 * HP:1 * HP] + 0.5         # sigmoid via pre-scaled tanh
        f_g = 0.5 * tg[:, 1 * HP:2 * HP] + 0.5
        g_g = tg[:, 2 * HP:3 * HP]
        o_g = 0.5 * tg[:, 3 * HP:4 * HP] + 0.5
        c = f_g * c + i_g * g_g
        h = o_g * jnp.tanh(c)
    h_f = h

    # ---- backward direction ---------------------------------------------------- #
    # The head reads only output[:, -1, :]; for the reverse LSTM that is its FIRST
    # step from h0 = c0 = 0, so the recurrent term is exactly zero (no matmul).
    wih_b = lsm_ref[2:3, :]
    b_b = lsm_ref[3:4, :]
    gb = z[:, t_seq - 1:t_seq] * wih_b + b_b           # (B, 4*HP)
    tb = jnp.tanh(gb)
    i_b = 0.5 * tb[:, 0 * HP:1 * HP] + 0.5
    g_b = tb[:, 2 * HP:3 * HP]
    o_b = 0.5 * tb[:, 3 * HP:4 * HP] + 0.5
    h_b = o_b * jnp.tanh(i_b * g_b)

    # ---- FC head: one fused matmul --------------------------------------------- #
    hcat = jnp.concatenate([h_f, h_b], axis=-1).astype(jnp.bfloat16)   # (B, 2*HP)
    fc1 = (jnp.dot(hcat, fc1w_ref[...], preferred_element_type=jnp.float32)
           + fcs_ref[0:1, :])
    fc1 = jnp.maximum(fc1, 0.0)                        # (B, 128); lanes [64:) are zero
    # Dropout(p=0.2) is the identity at inference time.
    # TODO(synk): training-mode dropout (random mask) intentionally not applied.
    logits = jnp.sum(fc1 * fcs_ref[1:2, :], axis=-1, keepdims=True) + scal_ref[4]
    out_ref[...] = jax.nn.sigmoid(logits)


# ------------------------------ host-side packing ---------------------------- #

def _make_folded_conv_slab(params, seq_len, wp):
    """Per stage, a (wp, 2*wp) matrix whose 128-lane-aligned halves produce the
    even/odd pooling columns of Conv1d(C=1, pad=8) directly: x @ slab[s] -> [even | odd].
    Rows beyond each stage's valid input length are zero (garbage-column safety)."""
    slabs = []
    cur = seq_len
    for name, k in CONV_SPECS:
        w = np.asarray(params[f"{name}_w"], np.float32)
        lout = cur + 2 * CONV_PAD - k + 1
        pooled = lout // 2
        j = np.arange(cur)[:, None]
        i = np.arange(lout)[None, :]
        tap = j - i + CONV_PAD
        valid = (tap >= 0) & (tap < k)
        toep = np.where(valid, w[np.clip(tap, 0, k - 1)], 0.0).astype(np.float32)
        mat = np.zeros((wp, 2 * wp), np.float32)
        mat[:cur, :pooled] = toep[:, 0:2 * pooled:2]                # even conv columns
        mat[:cur, wp:wp + pooled] = toep[:, 1:2 * pooled:2]         # odd conv columns
        slabs.append(mat)
        cur = pooled
    return np.stack(slabs)                                          # (4, wp, 2*wp)


def _pack_lstm_dir(params, d):
    """Pack PyTorch LSTM weights so gate g lives in lanes [g*HP, g*HP + H), with the
    0.5 pre-scale folded into the i/f/o gates for the single-tanh activation trick."""
    wih = np.asarray(params[f"wih_{d}"], np.float32).reshape(NG, H)   # input size 1
    whh = np.asarray(params[f"whh_{d}"], np.float32).reshape(NG, H, H)
    bias = (np.asarray(params[f"bih_{d}"], np.float32)
            + np.asarray(params[f"bhh_{d}"], np.float32)).reshape(NG, H)
    wih_p = np.zeros((GHP,), np.float32)
    b_p = np.zeros((GHP,), np.float32)
    whh_p = np.zeros((HP, GHP), np.float32)
    for g in range(NG):
        s = GATE_PRESCALE[g]
        wih_p[g * HP:g * HP + H] = s * wih[g]
        b_p[g * HP:g * HP + H] = s * bias[g]
        whh_p[:H, g * HP:g * HP + H] = s * whh[g].T
    return wih_p, b_p, whh_p


def prepare_kernel_params(params, seq_len):
    """One-time host-side packing of all parameters into a few lane-aligned slabs.
    MXU operands (conv slab, Whh_forward, fused fc1) are stored in bf16."""
    wp = _padded_width(seq_len)
    conv_slab = _make_folded_conv_slab(params, seq_len, wp)

    wih_f, b_f, whh_f = _pack_lstm_dir(params, "f")
    wih_b, b_b, _ = _pack_lstm_dir(params, "b")    # backward Whh unused (1 step, h0=c0=0)
    lstm_small = np.stack([wih_f, b_f, wih_b, b_b])                   # (4, 4*HP) f32

    # Fused fc1: rows [0:H) forward, [HP:HP+H) backward; columns padded 64 -> 128.
    w1 = np.asarray(params["fc1_w"], np.float32).T                    # (2H, 64)
    fc1w = np.zeros((2 * HP, 128), np.float32)
    fc1w[:H, :64] = w1[:H, :]
    fc1w[HP:HP + H, :64] = w1[H:2 * H, :]

    fc_small = np.zeros((2, 128), np.float32)
    fc_small[0, :64] = np.asarray(params["fc1_b"], np.float32)
    fc_small[1, :64] = np.asarray(params["fc2_w"], np.float32).reshape(64)

    scalars = np.array([float(params["c1_b"]), float(params["c2_b"]),
                        float(params["c3_b"]), float(params["c4_b"]),
                        float(params["fc2_b"][0])], np.float32)

    return {
        "scalars": jnp.asarray(scalars),
        "conv_slab": jnp.asarray(conv_slab, dtype=jnp.bfloat16),
        "whh_f": jnp.asarray(whh_f, dtype=jnp.bfloat16),
        "lstm_small": jnp.asarray(lstm_small),
        "fc1_w": jnp.asarray(fc1w, dtype=jnp.bfloat16),
        "fc_small": jnp.asarray(fc_small),
    }


# ---------------------------------- wrapper ----------------------------------- #

@jax.jit
def ppi_forward(x, kp):
    b, seq_len = x.shape
    t_seq = _stage_lengths(seq_len)[-1][1]
    wp = kp["conv_slab"].shape[1]

    x_pad = jnp.zeros((b, wp), jnp.float32).at[:, :seq_len].set(x.astype(jnp.float32))

    vmem = pltpu.MemorySpace.VMEM
    smem = pltpu.MemorySpace.SMEM

    # Batch-parallel grid only when there is enough work to shard (v7x: 2 TensorCores).
    use_grid = (b >= 16) and (b % 8 == 0)
    bm = 8 if use_grid else b

    kernel = functools.partial(ppi_kernel, t_seq)
    out_shape = jax.ShapeDtypeStruct((b, 1), jnp.float32)
    scratch = [pltpu.VMEM((bm, t_seq, GHP), jnp.float32)]
    operands = (kp["scalars"], x_pad, kp["conv_slab"], kp["whh_f"],
                kp["lstm_small"], kp["fc1_w"], kp["fc_small"])

    if use_grid:
        in_specs = [
            pl.BlockSpec(memory_space=smem),                    # scalars (whole, SMEM)
            pl.BlockSpec((bm, wp), lambda i: (i, 0)),           # x: batch row blocks
            pl.BlockSpec(memory_space=vmem),                    # conv slab (whole)
            pl.BlockSpec(memory_space=vmem),                    # whh_f (whole)
            pl.BlockSpec(memory_space=vmem),                    # lstm_small (whole)
            pl.BlockSpec(memory_space=vmem),                    # fc1_w (whole)
            pl.BlockSpec(memory_space=vmem),                    # fc_small (whole)
        ]
        return pl.pallas_call(
            kernel,
            out_shape=out_shape,
            grid=(b // bm,),
            in_specs=in_specs,
            out_specs=pl.BlockSpec((bm, 1), lambda i: (i, 0)),
            scratch_shapes=scratch,
            compiler_params=pltpu.CompilerParams(dimension_semantics=("parallel",)),
        )(*operands)

    in_specs = ([pl.BlockSpec(memory_space=smem)]
                + [pl.BlockSpec(memory_space=vmem)] * 6)
    return pl.pallas_call(
        kernel,
        out_shape=out_shape,
        in_specs=in_specs,
        out_specs=pl.BlockSpec(memory_space=vmem),
        scratch_shapes=scratch,
    )(*operands)


# -------------------------- deterministic parameters ------------------------- #

def _uniform(key, shape, bound):
    return jax.random.uniform(key, shape, jnp.float32, -bound, bound)


def init_model(key):
    """PyTorch-style uniform init for every parameter of PPIModel."""
    keys = iter(jax.random.split(key, 20))
    p = {}
    for name, k in CONV_SPECS:
        bnd = 1.0 / np.sqrt(k)
        p[f"{name}_w"] = _uniform(next(keys), (k,), bnd)
        p[f"{name}_b"] = _uniform(next(keys), (), bnd)
    bnd = 1.0 / np.sqrt(H)
    for d in ("f", "b"):
        p[f"wih_{d}"] = _uniform(next(keys), (4 * H, 1), bnd)
        p[f"whh_{d}"] = _uniform(next(keys), (4 * H, H), bnd)
        p[f"bih_{d}"] = _uniform(next(keys), (4 * H,), bnd)
        p[f"bhh_{d}"] = _uniform(next(keys), (4 * H,), bnd)
    p["fc1_w"] = _uniform(next(keys), (64, 2 * H), 1.0 / np.sqrt(2 * H))
    p["fc1_b"] = _uniform(next(keys), (64,), 1.0 / np.sqrt(2 * H))
    p["fc2_w"] = _uniform(next(keys), (1, 64), 1.0 / np.sqrt(64))
    p["fc2_b"] = _uniform(next(keys), (1,), 1.0 / np.sqrt(64))
    return p


# ------------------------------ pure-JAX reference --------------------------- #

def ppi_reference(x, params):
    """Direct re-implementation of the PyTorch forward (unpacked f32 params)."""
    z = x.astype(jnp.float32)
    for name, k in CONV_SPECS:
        w = params[f"{name}_w"]
        b = params[f"{name}_b"]
        lin = z.shape[1]
        lout = lin + 2 * CONV_PAD - k + 1
        zp = jnp.pad(z, ((0, 0), (CONV_PAD, CONV_PAD)))
        y = sum(w[j] * zp[:, j:j + lout] for j in range(k)) + b
        y = jnp.maximum(y, 0.0)
        p = lout // 2
        z = jnp.maximum(y[:, 0:2 * p:2], y[:, 1:2 * p:2])
    B, T = z.shape

    def cell(x_t, h, c, wih, whh, bih, bhh):
        gates = x_t @ wih.T + bih + h @ whh.T + bhh
        i = jax.nn.sigmoid(gates[:, 0:H])
        f = jax.nn.sigmoid(gates[:, H:2 * H])
        g = jnp.tanh(gates[:, 2 * H:3 * H])
        o = jax.nn.sigmoid(gates[:, 3 * H:4 * H])
        c = f * c + i * g
        return o * jnp.tanh(c), c

    h_f = jnp.zeros((B, H), jnp.float32)
    c_f = jnp.zeros((B, H), jnp.float32)
    for t in range(T):
        h_f, c_f = cell(z[:, t:t + 1], h_f, c_f, params["wih_f"], params["whh_f"],
                        params["bih_f"], params["bhh_f"])

    # Full reverse pass; keep the backward output aligned with the LAST original step.
    h_b = jnp.zeros((B, H), jnp.float32)
    c_b = jnp.zeros((B, H), jnp.float32)
    hb_at_last = None
    for t in reversed(range(T)):
        h_b, c_b = cell(z[:, t:t + 1], h_b, c_b, params["wih_b"], params["whh_b"],
                        params["bih_b"], params["bhh_b"])
        if t == T - 1:
            hb_at_last = h_b

    feat = jnp.concatenate([h_f, hb_at_last], axis=-1)
    fc1 = jnp.maximum(feat @ params["fc1_w"].T + params["fc1_b"], 0.0)
    return jax.nn.sigmoid(fc1 @ params["fc2_w"].T + params["fc2_b"])


# ------------------------------------- main ----------------------------------- #

if __name__ == "__main__":
    key = jax.random.PRNGKey(0)
    pkey, xkey, xkey2 = jax.random.split(key, 3)
    params = init_model(pkey)

    L = 16
    kp = prepare_kernel_params(params, L)      # one-time host-side packing (outside jit)

    # Small batch: single-program (ungridded) path.
    B = 2
    x = jax.random.normal(xkey, (B, L), jnp.float32)
    out = jax.block_until_ready(ppi_forward(x, kp))
    ref = np.asarray(ppi_reference(x, params))
    assert out.shape == (B, 1)
    assert np.all(np.isfinite(np.asarray(out)))
    np.testing.assert_allclose(np.asarray(out), ref, atol=1e-2, rtol=1e-2)

    # Larger batch: exercises the batch-parallel grid path (sharded on v7x megacore).
    B2 = 16
    x16 = jax.random.normal(xkey2, (B2, L), jnp.float32)
    out16 = jax.block_until_ready(ppi_forward(x16, kp))
    ref16 = np.asarray(ppi_reference(x16, params))
    assert out16.shape == (B2, 1)
    assert np.all(np.isfinite(np.asarray(out16)))
    np.testing.assert_allclose(np.asarray(out16), ref16, atol=1e-2, rtol=1e-2)

    print("KERNEL_OK")
</pallas_src>

<mosaic_0001>
module attributes {stable_mosaic.version = 11 : i64} {
  func.func @ppi_kernel(%arg0: memref<5xf32, #tpu.memory_space<smem>>, %arg1: memref<2x128xf32, #tpu.memory_space<vmem>>, %arg2: memref<4x128x256xbf16, #tpu.memory_space<vmem>>, %arg3: memref<128x512xbf16, #tpu.memory_space<vmem>>, %arg4: memref<4x512xf32, #tpu.memory_space<vmem>>, %arg5: memref<256x128xbf16, #tpu.memory_space<vmem>>, %arg6: memref<2x128xf32, #tpu.memory_space<vmem>>, %arg7: memref<2x1xf32, #tpu.memory_space<vmem>>, %arg8: memref<2x10x512xf32, #tpu.memory_space<vmem>>) attributes {dimension_semantics = [], scalar_prefetch = 0 : i64, scratch_operands = 1 : i64, tpu.core_type = #tpu.core_type<tc>} {
    %c0 = arith.constant 0 : index
    %c0_0 = arith.constant 0 : index
    %0 = vector.load %arg1[%c0, %c0_0] : memref<2x128xf32, #tpu.memory_space<vmem>>, vector<2x128xf32>
    %1 = arith.truncf %0 : vector<2x128xf32> to vector<2x128xbf16>
    %c0_1 = arith.constant 0 : index
    %c0_2 = arith.constant 0 : index
    %c0_3 = arith.constant 0 : index
    %2 = vector.load %arg2[%c0_1, %c0_2, %c0_3] : memref<4x128x256xbf16, #tpu.memory_space<vmem>>, vector<1x128x256xbf16>
    %3 = vector.shape_cast %2 : vector<1x128x256xbf16> to vector<128x256xbf16>
    %cst = arith.constant dense<0.000000e+00> : vector<2x256xf32>
    %4 = tpu.matmul %1, %3, %cst {dimension_numbers = #tpu.dot_dimension_numbers<[1], [0], [0], [1], [0, 0, 1, 1], [], []>} : vector<2x128xbf16>, vector<128x256xbf16>, vector<2x256xf32> -> vector<2x256xf32>
    %c0_4 = arith.constant 0 : index
    %5 = memref.load %arg0[%c0_4] : memref<5xf32, #tpu.memory_space<smem>>
    %6 = vector.broadcast %5 : f32 to vector<2x256xf32>
    %7 = arith.addf %4, %6 : vector<2x256xf32>
    %cst_5 = arith.constant 0.000000e+00 : f32
    %8 = vector.broadcast %cst_5 : f32 to vector<2x256xf32>
    %9 = arith.maximumf %7, %8 : vector<2x256xf32>
    %10 = vector.extract_strided_slice %9 {offsets = [0, 0], sizes = [2, 128], strides = [1, 1]} : vector<2x256xf32> to vector<2x128xf32>
    %11 = vector.extract_strided_slice %9 {offsets = [0, 128], sizes = [2, 128], strides = [1, 1]} : vector<2x256xf32> to vector<2x128xf32>
    %12 = arith.maximumf %10, %11 : vector<2x128xf32>
    %13 = arith.truncf %12 : vector<2x128xf32> to vector<2x128xbf16>
    %c1 = arith.constant 1 : index
    %c0_6 = arith.constant 0 : index
    %c0_7 = arith.constant 0 : index
    %14 = vector.load %arg2[%c1, %c0_6, %c0_7] : memref<4x128x256xbf16, #tpu.memory_space<vmem>>, vector<1x128x256xbf16>
    %15 = vector.shape_cast %14 : vector<1x128x256xbf16> to vector<128x256xbf16>
    %cst_8 = arith.constant dense<0.000000e+00> : vector<2x256xf32>
    %16 = tpu.matmul %13, %15, %cst_8 {dimension_numbers = #tpu.dot_dimension_numbers<[1], [0], [0], [1], [0, 0, 1, 1], [], []>} : vector<2x128xbf16>, vector<128x256xbf16>, vector<2x256xf32> -> vector<2x256xf32>
    %c1_9 = arith.constant 1 : index
    %17 = memref.load %arg0[%c1_9] : memref<5xf32, #tpu.memory_space<smem>>
    %18 = vector.broadcast %17 : f32 to vector<2x256xf32>
    %19 = arith.addf %16, %18 : vector<2x256xf32>
    %cst_10 = arith.constant 0.000000e+00 : f32
    %20 = vector.broadcast %cst_10 : f32 to vector<2x256xf32>
    %21 = arith.maximumf %19, %20 : vector<2x256xf32>
    %22 = vector.extract_strided_slice %21 {offsets = [0, 0], sizes = [2, 128], strides = [1, 1]} : vector<2x256xf32> to vector<2x128xf32>
    %23 = vector.extract_strided_slice %21 {offsets = [0, 128], sizes = [2, 128], strides = [1, 1]} : vector<2x256xf32> to vector<2x128xf32>
    %24 = arith.maximumf %22, %23 : vector<2x128xf32>
    %25 = arith.truncf %24 : vector<2x128xf32> to vector<2x128xbf16>
    %c2 = arith.constant 2 : index
    %c0_11 = arith.constant 0 : index
    %c0_12 = arith.constant 0 : index
    %26 = vector.load %arg2[%c2, %c0_11, %c0_12] : memref<4x128x256xbf16, #tpu.memory_space<vmem>>, vector<1x128x256xbf16>
    %27 = vector.shape_cast %26 : vector<1x128x256xbf16> to vector<128x256xbf16>
    %cst_13 = arith.constant dense<0.000000e+00> : vector<2x256xf32>
    %28 = tpu.matmul %25, %27, %cst_13 {dimension_numbers = #tpu.dot_dimension_numbers<[1], [0], [0], [1], [0, 0, 1, 1], [], []>} : vector<2x128xbf16>, vector<128x256xbf16>, vector<2x256xf32> -> vector<2x256xf32>
    %c2_14 = arith.constant 2 : index
    %29 = memref.load %arg0[%c2_14] : memref<5xf32, #tpu.memory_space<smem>>
    %30 = vector.broadcast %29 : f32 to vector<2x256xf32>
    %31 = arith.addf %28, %30 : vector<2x256xf32>
    %cst_15 = arith.constant 0.000000e+00 : f32
    %32 = vector.broadcast %cst_15 : f32 to vector<2x256xf32>
    %33 = arith.maximumf %31, %32 : vector<2x256xf32>
    %34 = vector.extract_strided_slice %33 {offsets = [0, 0], sizes = [2, 128], strides = [1, 1]} : vector<2x256xf32> to vector<2x128xf32>
    %35 = vector.extract_strided_slice %33 {offsets = [0, 128], sizes = [2, 128], strides = [1, 1]} : vector<2x256xf32> to vector<2x128xf32>
    %36 = arith.maximumf %34, %35 : vector<2x128xf32>
    %37 = arith.truncf %36 : vector<2x128xf32> to vector<2x128xbf16>
    %c3 = arith.constant 3 : index
    %c0_16 = arith.constant 0 : index
    %c0_17 = arith.constant 0 : index
    %38 = vector.load %arg2[%c3, %c0_16, %c0_17] : memref<4x128x256xbf16, #tpu.memory_space<vmem>>, vector<1x128x256xbf16>
    %39 = vector.shape_cast %38 : vector<1x128x256xbf16> to vector<128x256xbf16>
    %cst_18 = arith.constant dense<0.000000e+00> : vector<2x256xf32>
    %40 = tpu.matmul %37, %39, %cst_18 {dimension_numbers = #tpu.dot_dimension_numbers<[1], [0], [0], [1], [0, 0, 1, 1], [], []>} : vector<2x128xbf16>, vector<128x256xbf16>, vector<2x256xf32> -> vector<2x256xf32>
    %c3_19 = arith.constant 3 : index
    %41 = memref.load %arg0[%c3_19] : memref<5xf32, #tpu.memory_space<smem>>
    %42 = vector.broadcast %41 : f32 to vector<2x256xf32>
    %43 = arith.addf %40, %42 : vector<2x256xf32>
    %cst_20 = arith.constant 0.000000e+00 : f32
    %44 = vector.broadcast %cst_20 : f32 to vector<2x256xf32>
    %45 = arith.maximumf %43, %44 : vector<2x256xf32>
    %46 = vector.extract_strided_slice %45 {offsets = [0, 0], sizes = [2, 128], strides = [1, 1]} : vector<2x256xf32> to vector<2x128xf32>
    %47 = vector.extract_strided_slice %45 {offsets = [0, 128], sizes = [2, 128], strides = [1, 1]} : vector<2x256xf32> to vector<2x128xf32>
    %48 = arith.maximumf %46, %47 : vector<2x128xf32>
    %c0_21 = arith.constant 0 : index
    %c0_22 = arith.constant 0 : index
    %49 = vector.load %arg4[%c0_21, %c0_22] : memref<4x512xf32, #tpu.memory_space<vmem>>, vector<1x512xf32>
    %50 = vector.shape_cast %49 : vector<1x512xf32> to vector<1x1x512xf32>
    %c1_23 = arith.constant 1 : index
    %c0_24 = arith.constant 0 : index
    %51 = vector.load %arg4[%c1_23, %c0_24] : memref<4x512xf32, #tpu.memory_space<vmem>>, vector<1x512xf32>
    %52 = vector.shape_cast %51 : vector<1x512xf32> to vector<1x1x512xf32>
    %53 = vector.extract_strided_slice %48 {offsets = [0, 0], sizes = [2, 10], strides = [1, 1]} : vector<2x128xf32> to vector<2x10xf32>
    %54 = vector.shape_cast %53 : vector<2x10xf32> to vector<2x10x1xf32>
    %55 = vector.broadcast %54 : vector<2x10x1xf32> to vector<2x10x512xf32>
    %56 = vector.broadcast %50 : vector<1x1x512xf32> to vector<2x10x512xf32>
    %57 = arith.mulf %55, %56 : vector<2x10x512xf32>
    %58 = vector.broadcast %52 : vector<1x1x512xf32> to vector<2x10x512xf32>
    %59 = arith.addf %57, %58 : vector<2x10x512xf32>
    %c0_25 = arith.constant 0 : index
    %c0_26 = arith.constant 0 : index
    %c0_27 = arith.constant 0 : index
    %60 = vector.load %arg8[%c0_25, %c0_26, %c0_27] : memref<2x10x512xf32, #tpu.memory_space<vmem>>, vector<2x10x512xf32>
    tpu.vector_store %arg8[%c0_25, %c0_26, %c0_27], %59 {strides = array<i32>} : memref<2x10x512xf32, #tpu.memory_space<vmem>>, vector<2x10x512xf32>,
    %cst_28 = arith.constant 0.000000e+00 : f32
    %61 = vector.broadcast %cst_28 : f32 to vector<2x128xf32>
    %cst_29 = arith.constant 0.000000e+00 : f32
    %62 = vector.broadcast %cst_29 : f32 to vector<2x128xf32>
    %c0_30 = arith.constant 0 : index
    %c0_31 = arith.constant 0 : index
    %c0_32 = arith.constant 0 : index
    %63 = vector.load %arg8[%c0_30, %c0_31, %c0_32] : memref<2x10x512xf32, #tpu.memory_space<vmem>>, vector<2x1x512xf32>
    %64 = vector.shape_cast %63 : vector<2x1x512xf32> to vector<2x512xf32>
    %65 = arith.truncf %61 : vector<2x128xf32> to vector<2x128xbf16>
    %c0_33 = arith.constant 0 : index
    %c0_34 = arith.constant 0 : index
    %66 = vector.load %arg3[%c0_33, %c0_34] : memref<128x512xbf16, #tpu.memory_space<vmem>>, vector<128x512xbf16>
    %cst_35 = arith.constant dense<0.000000e+00> : vector<2x512xf32>
    %67 = tpu.matmul %65, %66, %cst_35 {dimension_numbers = #tpu.dot_dimension_numbers<[1], [0], [0], [1], [0, 0, 1, 1], [], []>} : vector<2x128xbf16>, vector<128x512xbf16>, vector<2x512xf32> -> vector<2x512xf32>
    %68 = arith.addf %67, %64 : vector<2x512xf32>
    %69 = math.tanh %68 : vector<2x512xf32>
    %70 = vector.extract_strided_slice %69 {offsets = [0, 0], sizes = [2, 128], strides = [1, 1]} : vector<2x512xf32> to vector<2x128xf32>
    %cst_36 = arith.constant 5.000000e-01 : f32
    %71 = vector.broadcast %cst_36 : f32 to vector<2x128xf32>
    %72 = arith.mulf %71, %70 : vector<2x128xf32>
    %cst_37 = arith.constant 5.000000e-01 : f32
    %73 = vector.broadcast %cst_37 : f32 to vector<2x128xf32>
    %74 = arith.addf %72, %73 : vector<2x128xf32>
    %75 = vector.extract_strided_slice %69 {offsets = [0, 128], sizes = [2, 128], strides = [1, 1]} : vector<2x512xf32> to vector<2x128xf32>
    %cst_38 = arith.constant 5.000000e-01 : f32
    %76 = vector.broadcast %cst_38 : f32 to vector<2x128xf32>
    %77 = arith.mulf %76, %75 : vector<2x128xf32>
    %cst_39 = arith.constant 5.000000e-01 : f32
    %78 = vector.broadcast %cst_39 : f32 to vector<2x128xf32>
    %79 = arith.addf %77, %78 : vector<2x128xf32>
    %80 = vector.extract_strided_slice %69 {offsets = [0, 256], sizes = [2, 128], strides = [1, 1]} : vector<2x512xf32> to vector<2x128xf32>
    %81 = vector.extract_strided_slice %69 {offsets = [0, 384], sizes = [2, 128], strides = [1, 1]} : vector<2x512xf32> to vector<2x128xf32>
    %cst_40 = arith.constant 5.000000e-01 : f32
    %82 = vector.broadcast %cst_40 : f32 to vector<2x128xf32>
    %83 = arith.mulf %82, %81 : vector<2x128xf32>
    %cst_41 = arith.constant 5.000000e-01 : f32
    %84 = vector.broadcast %cst_41 : f32 to vector<2x128xf32>
    %85 = arith.addf %83, %84 : vector<2x128xf32>
    %86 = arith.mulf %79, %62 : vector<2x128xf32>
    %87 = arith.mulf %74, %80 : vector<2x128xf32>
    %88 = arith.addf %86, %87 : vector<2x128xf32>
    %89 = math.tanh %88 : vector<2x128xf32>
    %90 = arith.mulf %85, %89 : vector<2x128xf32>
    %c0_42 = arith.constant 0 : index
    %c1_43 = arith.constant 1 : index
    %c0_44 = arith.constant 0 : index
    %91 = vector.load %arg8[%c0_42, %c1_43, %c0_44] : memref<2x10x512xf32, #tpu.memory_space<vmem>>, vector<2x1x512xf32>
    %92 = vector.shape_cast %91 : vector<2x1x512xf32> to vector<2x512xf32>
    %93 = arith.truncf %90 : vector<2x128xf32> to vector<2x128xbf16>
    %c0_45 = arith.constant 0 : index
    %c0_46 = arith.constant 0 : index
    %94 = vector.load %arg3[%c0_45, %c0_46] : memref<128x512xbf16, #tpu.memory_space<vmem>>, vector<128x512xbf16>
    %cst_47 = arith.constant dense<0.000000e+00> : vector<2x512xf32>
    %95 = tpu.matmul %93, %94, %cst_47 {dimension_numbers = #tpu.dot_dimension_numbers<[1], [0], [0], [1], [0, 0, 1, 1], [], []>} : vector<2x128xbf16>, vector<128x512xbf16>, vector<2x512xf32> -> vector<2x512xf32>
    %96 = arith.addf %95, %92 : vector<2x512xf32>
    %97 = math.tanh %96 : vector<2x512xf32>
    %98 = vector.extract_strided_slice %97 {offsets = [0, 0], sizes = [2, 128], strides = [1, 1]} : vector<2x512xf32> to vector<2x128xf32>
    %cst_48 = arith.constant 5.000000e-01 : f32
    %99 = vector.broadcast %cst_48 : f32 to vector<2x128xf32>
    %100 = arith.mulf %99, %98 : vector<2x128xf32>
    %cst_49 = arith.constant 5.000000e-01 : f32
    %101 = vector.broadcast %cst_49 : f32 to vector<2x128xf32>
    %102 = arith.addf %100, %101 : vector<2x128xf32>
    %103 = vector.extract_strided_slice %97 {offsets = [0, 128], sizes = [2, 128], strides = [1, 1]} : vector<2x512xf32> to vector<2x128xf32>
    %cst_50 = arith.constant 5.000000e-01 : f32
    %104 = vector.broadcast %cst_50 : f32 to vector<2x128xf32>
    %105 = arith.mulf %104, %103 : vector<2x128xf32>
    %cst_51 = arith.constant 5.000000e-01 : f32
    %106 = vector.broadcast %cst_51 : f32 to vector<2x128xf32>
    %107 = arith.addf %105, %106 : vector<2x128xf32>
    %108 = vector.extract_strided_slice %97 {offsets = [0, 256], sizes = [2, 128], strides = [1, 1]} : vector<2x512xf32> to vector<2x128xf32>
    %109 = vector.extract_strided_slice %97 {offsets = [0, 384], sizes = [2, 128], strides = [1, 1]} : vector<2x512xf32> to vector<2x128xf32>
    %cst_52 = arith.constant 5.000000e-01 : f32
    %110 = vector.broadcast %cst_52 : f32 to vector<2x128xf32>
    %111 = arith.mulf %110, %109 : vector<2x128xf32>
    %cst_53 = arith.constant 5.000000e-01 : f32
    %112 = vector.broadcast %cst_53 : f32 to vector<2x128xf32>
    %113 = arith.addf %111, %112 : vector<2x128xf32>
    %114 = arith.mulf %107, %88 : vector<2x128xf32>
    %115 = arith.mulf %102, %108 : vector<2x128xf32>
    %116 = arith.addf %114, %115 : vector<2x128xf32>
    %117 = math.tanh %116 : vector<2x128xf32>
    %118 = arith.mulf %113, %117 : vector<2x128xf32>
    %c0_54 = arith.constant 0 : index
    %c2_55 = arith.constant 2 : index
    %c0_56 = arith.constant 0 : index
    %119 = vector.load %arg8[%c0_54, %c2_55, %c0_56] : memref<2x10x512xf32, #tpu.memory_space<vmem>>, vector<2x1x512xf32>
    %120 = vector.shape_cast %119 : vector<2x1x512xf32> to vector<2x512xf32>
    %121 = arith.truncf %118 : vector<2x128xf32> to vector<2x128xbf16>
    %c0_57 = arith.constant 0 : index
    %c0_58 = arith.constant 0 : index
    %122 = vector.load %arg3[%c0_57, %c0_58] : memref<128x512xbf16, #tpu.memory_space<vmem>>, vector<128x512xbf16>
    %cst_59 = arith.constant dense<0.000000e+00> : vector<2x512xf32>
    %123 = tpu.matmul %121, %122, %cst_59 {dimension_numbers = #tpu.dot_dimension_numbers<[1], [0], [0], [1], [0, 0, 1, 1], [], []>} : vector<2x128xbf16>, vector<128x512xbf16>, vector<2x512xf32> -> vector<2x512xf32>
    %124 = arith.addf %123, %120 : vector<2x512xf32>
    %125 = math.tanh %124 : vector<2x512xf32>
    %126 = vector.extract_strided_slice %125 {offsets = [0, 0], sizes = [2, 128], strides = [1, 1]} : vector<2x512xf32> to vector<2x128xf32>
    %cst_60 = arith.constant 5.000000e-01 : f32
    %127 = vector.broadcast %cst_60 : f32 to vector<2x128xf32>
    %128 = arith.mulf %127, %126 : vector<2x128xf32>
    %cst_61 = arith.constant 5.000000e-01 : f32
    %129 = vector.broadcast %cst_61 : f32 to vector<2x128xf32>
    %130 = arith.addf %128, %129 : vector<2x128xf32>
    %131 = vector.extract_strided_slice %125 {offsets = [0, 128], sizes = [2, 128], strides = [1, 1]} : vector<2x512xf32> to vector<2x128xf32>
    %cst_62 = arith.constant 5.000000e-01 : f32
    %132 = vector.broadcast %cst_62 : f32 to vector<2x128xf32>
    %133 = arith.mulf %132, %131 : vector<2x128xf32>
    %cst_63 = arith.constant 5.000000e-01 : f32
    %134 = vector.broadcast %cst_63 : f32 to vector<2x128xf32>
    %135 = arith.addf %133, %134 : vector<2x128xf32>
    %136 = vector.extract_strided_slice %125 {offsets = [0, 256], sizes = [2, 128], strides = [1, 1]} : vector<2x512xf32> to vector<2x128xf32>
    %137 = vector.extract_strided_slice %125 {offsets = [0, 384], sizes = [2, 128], strides = [1, 1]} : vector<2x512xf32> to vector<2x128xf32>
    %cst_64 = arith.constant 5.000000e-01 : f32
    %138 = vector.broadcast %cst_64 : f32 to vector<2x128xf32>
    %139 = arith.mulf %138, %137 : vector<2x128xf32>
    %cst_65 = arith.constant 5.000000e-01 : f32
    %140 = vector.broadcast %cst_65 : f32 to vector<2x128xf32>
    %141 = arith.addf %139, %140 : vector<2x128xf32>
    %142 = arith.mulf %135, %116 : vector<2x128xf32>
    %143 = arith.mulf %130, %136 : vector<2x128xf32>
    %144 = arith.addf %142, %143 : vector<2x128xf32>
    %145 = math.tanh %144 : vector<2x128xf32>
    %146 = arith.mulf %141, %145 : vector<2x128xf32>
    %c0_66 = arith.constant 0 : index
    %c3_67 = arith.constant 3 : index
    %c0_68 = arith.constant 0 : index
    %147 = vector.load %arg8[%c0_66, %c3_67, %c0_68] : memref<2x10x512xf32, #tpu.memory_space<vmem>>, vector<2x1x512xf32>
    %148 = vector.shape_cast %147 : vector<2x1x512xf32> to vector<2x512xf32>
    %149 = arith.truncf %146 : vector<2x128xf32> to vector<2x128xbf16>
    %c0_69 = arith.constant 0 : index
    %c0_70 = arith.constant 0 : index
    %150 = vector.load %arg3[%c0_69, %c0_70] : memref<128x512xbf16, #tpu.memory_space<vmem>>, vector<128x512xbf16>
    %cst_71 = arith.constant dense<0.000000e+00> : vector<2x512xf32>
    %151 = tpu.matmul %149, %150, %cst_71 {dimension_numbers = #tpu.dot_dimension_numbers<[1], [0], [0], [1], [0, 0, 1, 1], [], []>} : vector<2x128xbf16>, vector<128x512xbf16>, vector<2x512xf32> -> vector<2x512xf32>
    %152 = arith.addf %151, %148 : vector<2x512xf32>
    %153 = math.tanh %152 : vector<2x512xf32>
    %154 = vector.extract_strided_slice %153 {offsets = [0, 0], sizes = [2, 128], strides = [1, 1]} : vector<2x512xf32> to vector<2x128xf32>
    %cst_72 = arith.constant 5.000000e-01 : f32
    %155 = vector.broadcast %cst_72 : f32 to vector<2x128xf32>
    %156 = arith.mulf %155, %154 : vector<2x128xf32>
    %cst_73 = arith.constant 5.000000e-01 : f32
    %157 = vector.broadcast %cst_73 : f32 to vector<2x128xf32>
    %158 = arith.addf %156, %157 : vector<2x128xf32>
    %159 = vector.extract_strided_slice %153 {offsets = [0, 128], sizes = [2, 128], strides = [1, 1]} : vector<2x512xf32> to vector<2x128xf32>
    %cst_74 = arith.constant 5.000000e-01 : f32
    %160 = vector.broadcast %cst_74 : f32 to vector<2x128xf32>
    %161 = arith.mulf %160, %159 : vector<2x128xf32>
    %cst_75 = arith.constant 5.000000e-01 : f32
    %162 = vector.broadcast %cst_75 : f32 to vector<2x128xf32>
    %163 = arith.addf %161, %162 : vector<2x128xf32>
    %164 = vector.extract_strided_slice %153 {offsets = [0, 256], sizes = [2, 128], strides = [1, 1]} : vector<2x512xf32> to vector<2x128xf32>
    %165 = vector.extract_strided_slice %153 {offsets = [0, 384], sizes = [2, 128], strides = [1, 1]} : vector<2x512xf32> to vector<2x128xf32>
    %cst_76 = arith.constant 5.000000e-01 : f32
    %166 = vector.broadcast %cst_76 : f32 to vector<2x128xf32>
    %167 = arith.mulf %166, %165 : vector<2x128xf32>
    %cst_77 = arith.constant 5.000000e-01 : f32
    %168 = vector.broadcast %cst_77 : f32 to vector<2x128xf32>
    %169 = arith.addf %167, %168 : vector<2x128xf32>
    %170 = arith.mulf %163, %144 : vector<2x128xf32>
    %171 = arith.mulf %158, %164 : vector<2x128xf32>
    %172 = arith.addf %170, %171 : vector<2x128xf32>
    %173 = math.tanh %172 : vector<2x128xf32>
    %174 = arith.mulf %169, %173 : vector<2x128xf32>
    %c0_78 = arith.constant 0 : index
    %c4 = arith.constant 4 : index
    %c0_79 = arith.constant 0 : index
    %175 = vector.load %arg8[%c0_78, %c4, %c0_79] : memref<2x10x512xf32, #tpu.memory_space<vmem>>, vector<2x1x512xf32>
    %176 = vector.shape_cast %175 : vector<2x1x512xf32> to vector<2x512xf32>
    %177 = arith.truncf %174 : vector<2x128xf32> to vector<2x128xbf16>
    %c0_80 = arith.constant 0 : index
    %c0_81 = arith.constant 0 : index
    %178 = vector.load %arg3[%c0_80, %c0_81] : memref<128x512xbf16, #tpu.memory_space<vmem>>, vector<128x512xbf16>
    %cst_82 = arith.constant dense<0.000000e+00> : vector<2x512xf32>
    %179 = tpu.matmul %177, %178, %cst_82 {dimension_numbers = #tpu.dot_dimension_numbers<[1], [0], [0], [1], [0, 0, 1, 1], [], []>} : vector<2x128xbf16>, vector<128x512xbf16>, vector<2x512xf32> -> vector<2x512xf32>
    %180 = arith.addf %179, %176 : vector<2x512xf32>
    %181 = math.tanh %180 : vector<2x512xf32>
    %182 = vector.extract_strided_slice %181 {offsets = [0, 0], sizes = [2, 128], strides = [1, 1]} : vector<2x512xf32> to vector<2x128xf32>
    %cst_83 = arith.constant 5.000000e-01 : f32
    %183 = vector.broadcast %cst_83 : f32 to vector<2x128xf32>
    %184 = arith.mulf %183, %182 : vector<2x128xf32>
    %cst_84 = arith.constant 5.000000e-01 : f32
    %185 = vector.broadcast %cst_84 : f32 to vector<2x128xf32>
    %186 = arith.addf %184, %185 : vector<2x128xf32>
    %187 = vector.extract_strided_slice %181 {offsets = [0, 128], sizes = [2, 128], strides = [1, 1]} : vector<2x512xf32> to vector<2x128xf32>
    %cst_85 = arith.constant 5.000000e-01 : f32
    %188 = vector.broadcast %cst_85 : f32 to vector<2x128xf32>
    %189 = arith.mulf %188, %187 : vector<2x128xf32>
    %cst_86 = arith.constant 5.000000e-01 : f32
    %190 = vector.broadcast %cst_86 : f32 to vector<2x128xf32>
    %191 = arith.addf %189, %190 : vector<2x128xf32>
    %192 = vector.extract_strided_slice %181 {offsets = [0, 256], sizes = [2, 128], strides = [1, 1]} : vector<2x512xf32> to vector<2x128xf32>
    %193 = vector.extract_strided_slice %181 {offsets = [0, 384], sizes = [2, 128], strides = [1, 1]} : vector<2x512xf32> to vector<2x128xf32>
    %cst_87 = arith.constant 5.000000e-01 : f32
    %194 = vector.broadcast %cst_87 : f32 to vector<2x128xf32>
    %195 = arith.mulf %194, %193 : vector<2x128xf32>
    %cst_88 = arith.constant 5.000000e-01 : f32
    %196 = vector.broadcast %cst_88 : f32 to vector<2x128xf32>
    %197 = arith.addf %195, %196 : vector<2x128xf32>
    %198 = arith.mulf %191, %172 : vector<2x128xf32>
    %199 = arith.mulf %186, %192 : vector<2x128xf32>
    %200 = arith.addf %198, %199 : vector<2x128xf32>
    %201 = math.tanh %200 : vector<2x128xf32>
    %202 = arith.mulf %197, %201 : vector<2x128xf32>
    %c0_89 = arith.constant 0 : index
    %c5 = arith.constant 5 : index
    %c0_90 = arith.constant 0 : index
    %203 = vector.load %arg8[%c0_89, %c5, %c0_90] : memref<2x10x512xf32, #tpu.memory_space<vmem>>, vector<2x1x512xf32>
    %204 = vector.shape_cast %203 : vector<2x1x512xf32> to vector<2x512xf32>
    %205 = arith.truncf %202 : vector<2x128xf32> to vector<2x128xbf16>
    %c0_91 = arith.constant 0 : index
    %c0_92 = arith.constant 0 : index
    %206 = vector.load %arg3[%c0_91, %c0_92] : memref<128x512xbf16, #tpu.memory_space<vmem>>, vector<128x512xbf16>
    %cst_93 = arith.constant dense<0.000000e+00> : vector<2x512xf32>
    %207 = tpu.matmul %205, %206, %cst_93 {dimension_numbers = #tpu.dot_dimension_numbers<[1], [0], [0], [1], [0, 0, 1, 1], [], []>} : vector<2x128xbf16>, vector<128x512xbf16>, vector<2x512xf32> -> vector<2x512xf32>
    %208 = arith.addf %207, %204 : vector<2x512xf32>
    %209 = math.tanh %208 : vector<2x512xf32>
    %210 = vector.extract_strided_slice %209 {offsets = [0, 0], sizes = [2, 128], strides = [1, 1]} : vector<2x512xf32> to vector<2x128xf32>
    %cst_94 = arith.constant 5.000000e-01 : f32
    %211 = vector.broadcast %cst_94 : f32 to vector<2x128xf32>
    %212 = arith.mulf %211, %210 : vector<2x128xf32>
    %cst_95 = arith.constant 5.000000e-01 : f32
    %213 = vector.broadcast %cst_95 : f32 to vector<2x128xf32>
    %214 = arith.addf %212, %213 : vector<2x128xf32>
    %215 = vector.extract_strided_slice %209 {offsets = [0, 128], sizes = [2, 128], strides = [1, 1]} : vector<2x512xf32> to vector<2x128xf32>
    %cst_96 = arith.constant 5.000000e-01 : f32
    %216 = vector.broadcast %cst_96 : f32 to vector<2x128xf32>
    %217 = arith.mulf %216, %215 : vector<2x128xf32>
    %cst_97 = arith.constant 5.000000e-01 : f32
    %218 = vector.broadcast %cst_97 : f32 to vector<2x128xf32>
    %219 = arith.addf %217, %218 : vector<2x128xf32>
    %220 = vector.extract_strided_slice %209 {offsets = [0, 256], sizes = [2, 128], strides = [1, 1]} : vector<2x512xf32> to vector<2x128xf32>
    %221 = vector.extract_strided_slice %209 {offsets = [0, 384], sizes = [2, 128], strides = [1, 1]} : vector<2x512xf32> to vector<2x128xf32>
    %cst_98 = arith.constant 5.000000e-01 : f32
    %222 = vector.broadcast %cst_98 : f32 to vector<2x128xf32>
    %223 = arith.mulf %222, %221 : vector<2x128xf32>
    %cst_99 = arith.constant 5.000000e-01 : f32
    %224 = vector.broadcast %cst_99 : f32 to vector<2x128xf32>
    %225 = arith.addf %223, %224 : vector<2x128xf32>
    %226 = arith.mulf %219, %200 : vector<2x128xf32>
    %227 = arith.mulf %214, %220 : vector<2x128xf32>
    %228 = arith.addf %226, %227 : vector<2x128xf32>
    %229 = math.tanh %228 : vector<2x128xf32>
    %230 = arith.mulf %225, %229 : vector<2x128xf32>
    %c0_100 = arith.constant 0 : index
    %c6 = arith.constant 6 : index
    %c0_101 = arith.constant 0 : index
    %231 = vector.load %arg8[%c0_100, %c6, %c0_101] : memref<2x10x512xf32, #tpu.memory_space<vmem>>, vector<2x1x512xf32>
    %232 = vector.shape_cast %231 : vector<2x1x512xf32> to vector<2x512xf32>
    %233 = arith.truncf %230 : vector<2x128xf32> to vector<2x128xbf16>
    %c0_102 = arith.constant 0 : index
    %c0_103 = arith.constant 0 : index
    %234 = vector.load %arg3[%c0_102, %c0_103] : memref<128x512xbf16, #tpu.memory_space<vmem>>, vector<128x512xbf16>
    %cst_104 = arith.constant dense<0.000000e+00> : vector<2x512xf32>
    %235 = tpu.matmul %233, %234, %cst_104 {dimension_numbers = #tpu.dot_dimension_numbers<[1], [0], [0], [1], [0, 0, 1, 1], [], []>} : vector<2x128xbf16>, vector<128x512xbf16>, vector<2x512xf32> -> vector<2x512xf32>
    %236 = arith.addf %235, %232 : vector<2x512xf32>
    %237 = math.tanh %236 : vector<2x512xf32>
    %238 = vector.extract_strided_slice %237 {offsets = [0, 0], sizes = [2, 128], strides = [1, 1]} : vector<2x512xf32> to vector<2x128xf32>
    %cst_105 = arith.constant 5.000000e-01 : f32
    %239 = vector.broadcast %cst_105 : f32 to vector<2x128xf32>
    %240 = arith.mulf %239, %238 : vector<2x128xf32>
    %cst_106 = arith.constant 5.000000e-01 : f32
    %241 = vector.broadcast %cst_106 : f32 to vector<2x128xf32>
    %242 = arith.addf %240, %241 : vector<2x128xf32>
    %243 = vector.extract_strided_slice %237 {offsets = [0, 128], sizes = [2, 128], strides = [1, 1]} : vector<2x512xf32> to vector<2x128xf32>
    %cst_107 = arith.constant 5.000000e-01 : f32
    %244 = vector.broadcast %cst_107 : f32 to vector<2x128xf32>
    %245 = arith.mulf %244, %243 : vector<2x128xf32>
    %cst_108 = arith.constant 5.000000e-01 : f32
    %246 = vector.broadcast %cst_108 : f32 to vector<2x128xf32>
    %247 = arith.addf %245, %246 : vector<2x128xf32>
    %248 = vector.extract_strided_slice %237 {offsets = [0, 256], sizes = [2, 128], strides = [1, 1]} : vector<2x512xf32> to vector<2x128xf32>
    %249 = vector.extract_strided_slice %237 {offsets = [0, 384], sizes = [2, 128], strides = [1, 1]} : vector<2x512xf32> to vector<2x128xf32>
    %cst_109 = arith.constant 5.000000e-01 : f32
    %250 = vector.broadcast %cst_109 : f32 to vector<2x128xf32>
    %251 = arith.mulf %250, %249 : vector<2x128xf32>
    %cst_110 = arith.constant 5.000000e-01 : f32
    %252 = vector.broadcast %cst_110 : f32 to vector<2x128xf32>
    %253 = arith.addf %251, %252 : vector<2x128xf32>
    %254 = arith.mulf %247, %228 : vector<2x128xf32>
    %255 = arith.mulf %242, %248 : vector<2x128xf32>
    %256 = arith.addf %254, %255 : vector<2x128xf32>
    %257 = math.tanh %256 : vector<2x128xf32>
    %258 = arith.mulf %253, %257 : vector<2x128xf32>
    %c0_111 = arith.constant 0 : index
    %c7 = arith.constant 7 : index
    %c0_112 = arith.constant 0 : index
    %259 = vector.load %arg8[%c0_111, %c7, %c0_112] : memref<2x10x512xf32, #tpu.memory_space<vmem>>, vector<2x1x512xf32>
    %260 = vector.shape_cast %259 : vector<2x1x512xf32> to vector<2x512xf32>
    %261 = arith.truncf %258 : vector<2x128xf32> to vector<2x128xbf16>
    %c0_113 = arith.constant 0 : index
    %c0_114 = arith.constant 0 : index
    %262 = vector.load %arg3[%c0_113, %c0_114] : memref<128x512xbf16, #tpu.memory_space<vmem>>, vector<128x512xbf16>
    %cst_115 = arith.constant dense<0.000000e+00> : vector<2x512xf32>
    %263 = tpu.matmul %261, %262, %cst_115 {dimension_numbers = #tpu.dot_dimension_numbers<[1], [0], [0], [1], [0, 0, 1, 1], [], []>} : vector<2x128xbf16>, vector<128x512xbf16>, vector<2x512xf32> -> vector<2x512xf32>
    %264 = arith.addf %263, %260 : vector<2x512xf32>
    %265 = math.tanh %264 : vector<2x512xf32>
    %266 = vector.extract_strided_slice %265 {offsets = [0, 0], sizes = [2, 128], strides = [1, 1]} : vector<2x512xf32> to vector<2x128xf32>
    %cst_116 = arith.constant 5.000000e-01 : f32
    %267 = vector.broadcast %cst_116 : f32 to vector<2x128xf32>
    %268 = arith.mulf %267, %266 : vector<2x128xf32>
    %cst_117 = arith.constant 5.000000e-01 : f32
    %269 = vector.broadcast %cst_117 : f32 to vector<2x128xf32>
    %270 = arith.addf %268, %269 : vector<2x128xf32>
    %271 = vector.extract_strided_slice %265 {offsets = [0, 128], sizes = [2, 128], strides = [1, 1]} : vector<2x512xf32> to vector<2x128xf32>
    %cst_118 = arith.constant 5.000000e-01 : f32
    %272 = vector.broadcast %cst_118 : f32 to vector<2x128xf32>
    %273 = arith.mulf %272, %271 : vector<2x128xf32>
    %cst_119 = arith.constant 5.000000e-01 : f32
    %274 = vector.broadcast %cst_119 : f32 to vector<2x128xf32>
    %275 = arith.addf %273, %274 : vector<2x128xf32>
    %276 = vector.extract_strided_slice %265 {offsets = [0, 256], sizes = [2, 128], strides = [1, 1]} : vector<2x512xf32> to vector<2x128xf32>
    %277 = vector.extract_strided_slice %265 {offsets = [0, 384], sizes = [2, 128], strides = [1, 1]} : vector<2x512xf32> to vector<2x128xf32>
    %cst_120 = arith.constant 5.000000e-01 : f32
    %278 = vector.broadcast %cst_120 : f32 to vector<2x128xf32>
    %279 = arith.mulf %278, %277 : vector<2x128xf32>
    %cst_121 = arith.constant 5.000000e-01 : f32
    %280 = vector.broadcast %cst_121 : f32 to vector<2x128xf32>
    %281 = arith.addf %279, %280 : vector<2x128xf32>
    %282 = arith.mulf %275, %256 : vector<2x128xf32>
    %283 = arith.mulf %270, %276 : vector<2x128xf32>
    %284 = arith.addf %282, %283 : vector<2x128xf32>
    %285 = math.tanh %284 : vector<2x128xf32>
    %286 = arith.mulf %281, %285 : vector<2x128xf32>
    %c0_122 = arith.constant 0 : index
    %c8 = arith.constant 8 : index
    %c0_123 = arith.constant 0 : index
    %287 = vector.load %arg8[%c0_122, %c8, %c0_123] : memref<2x10x512xf32, #tpu.memory_space<vmem>>, vector<2x1x512xf32>
    %288 = vector.shape_cast %287 : vector<2x1x512xf32> to vector<2x512xf32>
    %289 = arith.truncf %286 : vector<2x128xf32> to vector<2x128xbf16>
    %c0_124 = arith.constant 0 : index
    %c0_125 = arith.constant 0 : index
    %290 = vector.load %arg3[%c0_124, %c0_125] : memref<128x512xbf16, #tpu.memory_space<vmem>>, vector<128x512xbf16>
    %cst_126 = arith.constant dense<0.000000e+00> : vector<2x512xf32>
    %291 = tpu.matmul %289, %290, %cst_126 {dimension_numbers = #tpu.dot_dimension_numbers<[1], [0], [0], [1], [0, 0, 1, 1], [], []>} : vector<2x128xbf16>, vector<128x512xbf16>, vector<2x512xf32> -> vector<2x512xf32>
    %292 = arith.addf %291, %288 : vector<2x512xf32>
    %293 = math.tanh %292 : vector<2x512xf32>
    %294 = vector.extract_strided_slice %293 {offsets = [0, 0], sizes = [2, 128], strides = [1, 1]} : vector<2x512xf32> to vector<2x128xf32>
    %cst_127 = arith.constant 5.000000e-01 : f32
    %295 = vector.broadcast %cst_127 : f32 to vector<2x128xf32>
    %296 = arith.mulf %295, %294 : vector<2x128xf32>
    %cst_128 = arith.constant 5.000000e-01 : f32
    %297 = vector.broadcast %cst_128 : f32 to vector<2x128xf32>
    %298 = arith.addf %296, %297 : vector<2x128xf32>
    %299 = vector.extract_strided_slice %293 {offsets = [0, 128], sizes = [2, 128], strides = [1, 1]} : vector<2x512xf32> to vector<2x128xf32>
    %cst_129 = arith.constant 5.000000e-01 : f32
    %300 = vector.broadcast %cst_129 : f32 to vector<2x128xf32>
    %301 = arith.mulf %300, %299 : vector<2x128xf32>
    %cst_130 = arith.constant 5.000000e-01 : f32
    %302 = vector.broadcast %cst_130 : f32 to vector<2x128xf32>
    %303 = arith.addf %301, %302 : vector<2x128xf32>
    %304 = vector.extract_strided_slice %293 {offsets = [0, 256], sizes = [2, 128], strides = [1, 1]} : vector<2x512xf32> to vector<2x128xf32>
    %305 = vector.extract_strided_slice %293 {offsets = [0, 384], sizes = [2, 128], strides = [1, 1]} : vector<2x512xf32> to vector<2x128xf32>
    %cst_131 = arith.constant 5.000000e-01 : f32
    %306 = vector.broadcast %cst_131 : f32 to vector<2x128xf32>
    %307 = arith.mulf %306, %305 : vector<2x128xf32>
    %cst_132 = arith.constant 5.000000e-01 : f32
    %308 = vector.broadcast %cst_132 : f32 to vector<2x128xf32>
    %309 = arith.addf %307, %308 : vector<2x128xf32>
    %310 = arith.mulf %303, %284 : vector<2x128xf32>
    %311 = arith.mulf %298, %304 : vector<2x128xf32>
    %312 = arith.addf %310, %311 : vector<2x128xf32>
    %313 = math.tanh %312 : vector<2x128xf32>
    %314 = arith.mulf %309, %313 : vector<2x128xf32>
    %c0_133 = arith.constant 0 : index
    %c9 = arith.constant 9 : index
    %c0_134 = arith.constant 0 : index
    %315 = vector.load %arg8[%c0_133, %c9, %c0_134] : memref<2x10x512xf32, #tpu.memory_space<vmem>>, vector<2x1x512xf32>
    %316 = vector.shape_cast %315 : vector<2x1x512xf32> to vector<2x512xf32>
    %317 = arith.truncf %314 : vector<2x128xf32> to vector<2x128xbf16>
    %c0_135 = arith.constant 0 : index
    %c0_136 = arith.constant 0 : index
    %318 = vector.load %arg3[%c0_135, %c0_136] : memref<128x512xbf16, #tpu.memory_space<vmem>>, vector<128x512xbf16>
    %cst_137 = arith.constant dense<0.000000e+00> : vector<2x512xf32>
    %319 = tpu.matmul %317, %318, %cst_137 {dimension_numbers = #tpu.dot_dimension_numbers<[1], [0], [0], [1], [0, 0, 1, 1], [], []>} : vector<2x128xbf16>, vector<128x512xbf16>, vector<2x512xf32> -> vector<2x512xf32>
    %320 = arith.addf %319, %316 : vector<2x512xf32>
    %321 = math.tanh %320 : vector<2x512xf32>
    %322 = vector.extract_strided_slice %321 {offsets = [0, 0], sizes = [2, 128], strides = [1, 1]} : vector<2x512xf32> to vector<2x128xf32>
    %cst_138 = arith.constant 5.000000e-01 : f32
    %323 = vector.broadcast %cst_138 : f32 to vector<2x128xf32>
    %324 = arith.mulf %323, %322 : vector<2x128xf32>
    %cst_139 = arith.constant 5.000000e-01 : f32
    %325 = vector.broadcast %cst_139 : f32 to vector<2x128xf32>
    %326 = arith.addf %324, %325 : vector<2x128xf32>
    %327 = vector.extract_strided_slice %321 {offsets = [0, 128], sizes = [2, 128], strides = [1, 1]} : vector<2x512xf32> to vector<2x128xf32>
    %cst_140 = arith.constant 5.000000e-01 : f32
    %328 = vector.broadcast %cst_140 : f32 to vector<2x128xf32>
    %329 = arith.mulf %328, %327 : vector<2x128xf32>
    %cst_141 = arith.constant 5.000000e-01 : f32
    %330 = vector.broadcast %cst_141 : f32 to vector<2x128xf32>
    %331 = arith.addf %329, %330 : vector<2x128xf32>
    %332 = vector.extract_strided_slice %321 {offsets = [0, 256], sizes = [2, 128], strides = [1, 1]} : vector<2x512xf32> to vector<2x128xf32>
    %333 = vector.extract_strided_slice %321 {offsets = [0, 384], sizes = [2, 128], strides = [1, 1]} : vector<2x512xf32> to vector<2x128xf32>
    %cst_142 = arith.constant 5.000000e-01 : f32
    %334 = vector.broadcast %cst_142 : f32 to vector<2x128xf32>
    %335 = arith.mulf %334, %333 : vector<2x128xf32>
    %cst_143 = arith.constant 5.000000e-01 : f32
    %336 = vector.broadcast %cst_143 : f32 to vector<2x128xf32>
    %337 = arith.addf %335, %336 : vector<2x128xf32>
    %338 = arith.mulf %331, %312 : vector<2x128xf32>
    %339 = arith.mulf %326, %332 : vector<2x128xf32>
    %340 = arith.addf %338, %339 : vector<2x128xf32>
    %341 = math.tanh %340 : vector<2x128xf32>
    %342 = arith.mulf %337, %341 : vector<2x128xf32>
    %c2_144 = arith.constant 2 : index
    %c0_145 = arith.constant 0 : index
    %343 = vector.load %arg4[%c2_144, %c0_145] : memref<4x512xf32, #tpu.memory_space<vmem>>, vector<1x512xf32>
    %c3_146 = arith.constant 3 : index
    %c0_147 = arith.constant 0 : index
    %344 = vector.load %arg4[%c3_146, %c0_147] : memref<4x512xf32, #tpu.memory_space<vmem>>, vector<1x512xf32>
    %345 = vector.extract_strided_slice %48 {offsets = [0, 9], sizes = [2, 1], strides = [1, 1]} : vector<2x128xf32> to vector<2x1xf32>
    %346 = vector.broadcast %345 : vector<2x1xf32> to vector<2x512xf32>
    %347 = vector.broadcast %343 : vector<1x512xf32> to vector<2x512xf32>
    %348 = arith.mulf %346, %347 : vector<2x512xf32>
    %349 = vector.broadcast %344 : vector<1x512xf32> to vector<2x512xf32>
    %350 = arith.addf %348, %349 : vector<2x512xf32>
    %351 = math.tanh %350 : vector<2x512xf32>
    %352 = vector.extract_strided_slice %351 {offsets = [0, 0], sizes = [2, 128], strides = [1, 1]} : vector<2x512xf32> to vector<2x128xf32>
    %cst_148 = arith.constant 5.000000e-01 : f32
    %353 = vector.broadcast %cst_148 : f32 to vector<2x128xf32>
    %354 = arith.mulf %353, %352 : vector<2x128xf32>
    %cst_149 = arith.constant 5.000000e-01 : f32
    %355 = vector.broadcast %cst_149 : f32 to vector<2x128xf32>
    %356 = arith.addf %354, %355 : vector<2x128xf32>
    %357 = vector.extract_strided_slice %351 {offsets = [0, 256], sizes = [2, 128], strides = [1, 1]} : vector<2x512xf32> to vector<2x128xf32>
    %358 = vector.extract_strided_slice %351 {offsets = [0, 384], sizes = [2, 128], strides = [1, 1]} : vector<2x512xf32> to vector<2x128xf32>
    %cst_150 = arith.constant 5.000000e-01 : f32
    %359 = vector.broadcast %cst_150 : f32 to vector<2x128xf32>
    %360 = arith.mulf %359, %358 : vector<2x128xf32>
    %cst_151 = arith.constant 5.000000e-01 : f32
    %361 = vector.broadcast %cst_151 : f32 to vector<2x128xf32>
    %362 = arith.addf %360, %361 : vector<2x128xf32>
    %363 = arith.mulf %356, %357 : vector<2x128xf32>
    %364 = math.tanh %363 : vector<2x128xf32>
    %365 = arith.mulf %362, %364 : vector<2x128xf32>
    %366 = tpu.concatenate %342, %365 in 1 : vector<2x128xf32>, vector<2x128xf32> -> vector<2x256xf32>
    %367 = arith.truncf %366 : vector<2x256xf32> to vector<2x256xbf16>
    %c0_152 = arith.constant 0 : index
    %c0_153 = arith.constant 0 : index
    %368 = vector.load %arg5[%c0_152, %c0_153] : memref<256x128xbf16, #tpu.memory_space<vmem>>, vector<256x128xbf16>
    %cst_154 = arith.constant dense<0.000000e+00> : vector<2x128xf32>
    %369 = tpu.matmul %367, %368, %cst_154 {dimension_numbers = #tpu.dot_dimension_numbers<[1], [0], [0], [1], [0, 0, 1, 1], [], []>} : vector<2x256xbf16>, vector<256x128xbf16>, vector<2x128xf32> -> vector<2x128xf32>
    %c0_155 = arith.constant 0 : index
    %c0_156 = arith.constant 0 : index
    %370 = vector.load %arg6[%c0_155, %c0_156] : memref<2x128xf32, #tpu.memory_space<vmem>>, vector<1x128xf32>
    %371 = vector.broadcast %370 : vector<1x128xf32> to vector<2x128xf32>
    %372 = arith.addf %369, %371 : vector<2x128xf32>
    %cst_157 = arith.constant 0.000000e+00 : f32
    %373 = vector.broadcast %cst_157 : f32 to vector<2x128xf32>
    %374 = arith.maximumf %372, %373 : vector<2x128xf32>
    %c1_158 = arith.constant 1 : index
    %c0_159 = arith.constant 0 : index
    %375 = vector.load %arg6[%c1_158, %c0_159] : memref<2x128xf32, #tpu.memory_space<vmem>>, vector<1x128xf32>
    %376 = vector.broadcast %375 : vector<1x128xf32> to vector<2x128xf32>
    %377 = arith.mulf %374, %376 : vector<2x128xf32>
    %cst_160 = arith.constant dense<0.000000e+00> : vector<2xf32>
    %378 = vector.multi_reduction <add>, %377, %cst_160 [1] : vector<2x128xf32> to vector<2xf32>
    %379 = vector.shape_cast %378 : vector<2xf32> to vector<2x1xf32>
    %c4_161 = arith.constant 4 : index
    %380 = memref.load %arg0[%c4_161] : memref<5xf32, #tpu.memory_space<smem>>
    %381 = vector.broadcast %380 : f32 to vector<2x1xf32>
    %382 = arith.addf %379, %381 : vector<2x1xf32>
    %383 = arith.negf %382 : vector<2x1xf32>
    %384 = math.exp %383 : vector<2x1xf32>
    %cst_162 = arith.constant 1.000000e+00 : f32
    %385 = vector.broadcast %cst_162 : f32 to vector<2x1xf32>
    %386 = arith.addf %385, %384 : vector<2x1xf32>
    %387 = arith.divf %385, %386 : vector<2x1xf32>
    %c0_163 = arith.constant 0 : index
    %c0_164 = arith.constant 0 : index
    %388 = vector.load %arg7[%c0_163, %c0_164] : memref<2x1xf32, #tpu.memory_space<vmem>>, vector<2x1xf32>
    tpu.vector_store %arg7[%c0_163, %c0_164], %387 {strides = array<i32>} : memref<2x1xf32, #tpu.memory_space<vmem>>, vector<2x1xf32>,
    return
  }
}

</mosaic_0001>

<llo_original>
// kernel: ppi_forward.1
$region0: #{ppi_forward.1}
  #allocation0 [shape = 'u32[]', space=smem, size = 0x4, offset = 0x4, fixed_abs, tag = 'smem constant byte address 0x4 - core index']
  #allocation1 [shape = 'u32[72,128]{1,0:T(1,128)}', space=vmem, size = 0x9000, scoped, tag = 'internal scratch']
  #allocation2 [shape = 'f32[2,10,512]{2,1,0:T(8,128)}', space=vmem, size = 0x10000, scoped, tag = 'scratch operand']
  %s0 = inlined_call_operand.vmem [shape: f32[5], index: 0, kind: input, shape index: {}]
  %s1 = inlined_call_operand.vmem [shape: f32[2,128], index: 1, kind: input, shape index: {}]
  %s2 = inlined_call_operand.hbm [shape: bf16[4,128,256], index: 2, kind: input, shape index: {}]
  %s3 = inlined_call_operand.hbm [shape: bf16[128,512], index: 3, kind: input, shape index: {}]
  %s4 = inlined_call_operand.hbm [shape: f32[4,512], index: 4, kind: input, shape index: {}]
  %s5 = inlined_call_operand.hbm [shape: bf16[256,128], index: 5, kind: input, shape index: {}]
  %s6 = inlined_call_operand.vmem [shape: f32[2,128], index: 6, kind: input, shape index: {}]
  %s7 = inlined_call_operand.vmem [shape: f32[2,1], index: 7, kind: output, shape index: {}]
  %s8 = sld [smem:[#allocation0]]
  $region58: #{ppi_forward.1} parent=0
    _
  %s10 = ssub.s32 1, %s8
  %s11 = scalar_select 0, %s10, %s8
  $region1: #{ppi_forward.1} parent=0
    #allocation3 [shape = 'u8[512]{0}', space=smem, size = 0x200, scoped, tag = 'input window, operand 0, single buffered']
    #allocation4 [shape = 's32[1]{0}', space=sflag, size = 0x4, scoped, tag = 'scoped memory for ppi_forward.1']
    #allocation5 [shape = 's32[1]{0}', space=sflag, size = 0x4, scoped, tag = 'scoped memory for ppi_forward.1']
    #allocation6 [shape = 'u8[262144]{0}', space=vmem, size = 0x40000, scoped, tag = 'input window, operand 2, single buffered']
    #allocation7 [shape = 'u8[131072]{0}', space=vmem, size = 0x20000, scoped, tag = 'input window, operand 3, single buffered']
    #allocation8 [shape = 's32[1]{0}', space=sflag, size = 0x4, scoped, tag = 'scoped memory for ppi_forward.1']
    #allocation9 [shape = 'u8[8192]{0}', space=vmem, size = 0x2000, scoped, tag = 'input window, operand 4, single buffered']
    #allocation10 [shape = 'u8[65536]{0}', space=vmem, size = 0x10000, scoped, tag = 'input window, operand 5, single buffered']
    #allocation11 [shape = 's32[1]{0}', space=sflag, size = 0x4, scoped, tag = 'scoped memory for ppi_forward.1']
    %12 = vsyncpa [#allocation5], 0
    %13 = vsyncpa [#allocation4], 0
    %14 = vsyncpa [#allocation8], 0
    %15 = vsyncpa [#allocation11], 0
    // Predicated region
    $region2: #{ppi_forward.1} parent=1 // pred_check
      _
    $region3: #{ppi_forward.1} parent=1 // pred_check_branch
      %17 = sbr.rel (0) target = $region5
    $region4: #{ppi_forward.1} parent=1 // pred_region
      %19 = vsyncadd [#allocation5], 0
      %s21 = sshll.u32 %s0, 4
      %s22 = int_to_ptr.vmem [resolvable:$true] %s21
      %24 = dma.vmem_to_smem %s22, 16, [#allocation3], [#allocation5]
    $region5: #{ppi_forward.1} parent=1 // pred_fallthru
      _
    // Predicated region
    $region6: #{ppi_forward.1} parent=1 // pred_check
      _
    $region7: #{ppi_forward.1} parent=1 // pred_check_branch
      %26 = sbr.rel (0) target = $region9
    $region8: #{ppi_forward.1} parent=1 // pred_region
      _
    $region9: #{ppi_forward.1} parent=1 // pred_fallthru
      _
    // Predicated region
    $region10: #{ppi_forward.1} parent=1 // pred_check
      _
    $region11: #{ppi_forward.1} parent=1 // pred_check_branch
      %28 = sbr.rel (0) target = $region13
    $region12: #{ppi_forward.1} parent=1 // pred_region
      %30 = vsyncadd [#allocation4], 0
      %s31 = sshll.u32 %s2, 4
      %s32 = int_to_ptr.hbm [resolvable:$true] %s31
      %s33 = sshll.u32 [#allocation6], 4
      %s34 = int_to_ptr.vmem [resolvable:$true] %s33
      %39 = dma.hbm_to_vmem [thread:$0]  %s32, 8192, %s34, [#allocation4], 128, 128, 8
    $region13: #{ppi_forward.1} parent=1 // pred_fallthru
      _
    // Predicated region
    $region14: #{ppi_forward.1} parent=1 // pred_check
      _
    $region15: #{ppi_forward.1} parent=1 // pred_check_branch
      %41 = sbr.rel (0) target = $region17
    $region16: #{ppi_forward.1} parent=1 // pred_region
      %43 = vsyncadd [#allocation8], 0
      %s44 = sshll.u32 %s3, 4
      %s45 = int_to_ptr.hbm [resolvable:$true] %s44
      %s46 = sshll.u32 [#allocation7], 4
      %s47 = int_to_ptr.vmem [resolvable:$true] %s46
      %52 = dma.hbm_to_vmem [thread:$0]  %s45, 4096, %s47, [#allocation8], 256, 256, 16
    $region17: #{ppi_forward.1} parent=1 // pred_fallthru
      _
    // Predicated region
    $region18: #{ppi_forward.1} parent=1 // pred_check
      _
    $region19: #{ppi_forward.1} parent=1 // pred_check_branch
      %54 = sbr.rel (0) target = $region21
    $region20: #{ppi_forward.1} parent=1 // pred_region
      %56 = vsyncadd [#allocation8], 0
      %s58 = sshll.u32 %s4, 4
      %s59 = int_to_ptr.hbm [resolvable:$true] %s58
      %s60 = sshll.u32 [#allocation9], 4
      %s61 = int_to_ptr.vmem [resolvable:$true] %s60
      %63 = dma.hbm_to_vmem [thread:$0]  %s59, 256, %s61, [#allocation8]
    $region21: #{ppi_forward.1} parent=1 // pred_fallthru
      _
    // Predicated region
    $region22: #{ppi_forward.1} parent=1 // pred_check
      _
    $region23: #{ppi_forward.1} parent=1 // pred_check_branch
      %65 = sbr.rel (0) target = $region25
    $region24: #{ppi_forward.1} parent=1 // pred_region
      %67 = vsyncadd [#allocation11], 0
      %s68 = sshll.u32 %s5, 4
      %s69 = int_to_ptr.hbm [resolvable:$true] %s68
      %s70 = sshll.u32 [#allocation10], 4
      %s71 = int_to_ptr.vmem [resolvable:$true] %s70
      %76 = dma.hbm_to_vmem [thread:$0]  %s69, 2048, %s71, [#allocation11], 64, 64, 4
    $region25: #{ppi_forward.1} parent=1 // pred_fallthru
      _
    // Predicated region
    $region26: #{ppi_forward.1} parent=1 // pred_check
      _
    $region27: #{ppi_forward.1} parent=1 // pred_check_branch
      %78 = sbr.rel (0) target = $region29
    $region28: #{ppi_forward.1} parent=1 // pred_region
      _
    $region29: #{ppi_forward.1} parent=1 // pred_fallthru
      _
    // Predicated region
    $region30: #{ppi_forward.1} parent=1 // pred_check
      _
    $region31: #{ppi_forward.1} parent=1 // pred_check_branch
      %80 = sbr.rel (0) target = $region33
    $region32: #{ppi_forward.1} parent=1 // pred_region
      %82 = dma.done [#allocation5], 16
    $region33: #{ppi_forward.1} parent=1 // pred_fallthru
      _
    // Predicated region
    $region34: #{ppi_forward.1} parent=1 // pred_check
      _
    $region35: #{ppi_forward.1} parent=1 // pred_check_branch
      %84 = sbr.rel (0) target = $region37
    $region36: #{ppi_forward.1} parent=1 // pred_region
      %86 = dma.done [#allocation4], 8192
    $region37: #{ppi_forward.1} parent=1 // pred_fallthru
      _
    // Predicated region
    $region38: #{ppi_forward.1} parent=1 // pred_check
      _
    $region39: #{ppi_forward.1} parent=1 // pred_check_branch
      %88 = sbr.rel (0) target = $region41
    $region40: #{ppi_forward.1} parent=1 // pred_region
      %90 = dma.done [#allocation8], 4096
    $region41: #{ppi_forward.1} parent=1 // pred_fallthru
      _
    // Predicated region
    $region42: #{ppi_forward.1} parent=1 // pred_check
      _
    $region43: #{ppi_forward.1} parent=1 // pred_check_branch
      %92 = sbr.rel (0) target = $region45
    $region44: #{ppi_forward.1} parent=1 // pred_region
      %94 = dma.done [#allocation8], 256
    $region45: #{ppi_forward.1} parent=1 // pred_fallthru
      _
    // Predicated region
    $region46: #{ppi_forward.1} parent=1 // pred_check
      _
    $region47: #{ppi_forward.1} parent=1 // pred_check_branch
      %96 = sbr.rel (0) target = $region49
    $region48: #{ppi_forward.1} parent=1 // pred_region
      %98 = dma.done [#allocation11], 2048
    $region49: #{ppi_forward.1} parent=1 // pred_fallthru
      _
    %99 = sfence
    %v101 = vld [vmem:[%s1] sm:$0x3]
    %v102 = vpack.c.bf16 %v101, %v101
    %v103 = vld [vmem:[#allocation6] sm:$0xff]
    %v104 = vld [vmem:[#allocation6 + $0x8] sm:$0xff]
    %v105 = vld [vmem:[#allocation6 + $0x10] sm:$0xff]
    %v106 = vld [vmem:[#allocation6 + $0x18] sm:$0xff]
    %v107 = vld [vmem:[#allocation6 + $0x20] sm:$0xff]
    %v108 = vld [vmem:[#allocation6 + $0x28] sm:$0xff]
    %v109 = vld [vmem:[#allocation6 + $0x30] sm:$0xff]
    %v110 = vld [vmem:[#allocation6 + $0x38] sm:$0xff]
    %v111 = vld [vmem:[#allocation6 + $0x40] sm:$0xff]
    %v112 = vld [vmem:[#allocation6 + $0x48] sm:$0xff]
    %v113 = vld [vmem:[#allocation6 + $0x50] sm:$0xff]
    %v114 = vld [vmem:[#allocation6 + $0x58] sm:$0xff]
    %v115 = vld [vmem:[#allocation6 + $0x60] sm:$0xff]
    %v116 = vld [vmem:[#allocation6 + $0x68] sm:$0xff]
    %v117 = vld [vmem:[#allocation6 + $0x70] sm:$0xff]
    %v118 = vld [vmem:[#allocation6 + $0x78] sm:$0xff]
    %s119 = sld [smem:[#allocation3]]
    %v120 = vstv %s119
    %v137 = vunpack.c.l.b16 %v103
    %v138 = vunpack.c.h.b16 %v103
    %v139 = vunpack.c.l.b16 %v104
    %v140 = vunpack.c.h.b16 %v104
    %v141 = vunpack.c.l.b16 %v105
    %v142 = vunpack.c.h.b16 %v105
    %v143 = vunpack.c.l.b16 %v106
    %v144 = vunpack.c.h.b16 %v106
    %v145 = vunpack.c.l.b16 %v107
    %v146 = vunpack.c.h.b16 %v107
    %v147 = vunpack.c.l.b16 %v108
    %v148 = vunpack.c.h.b16 %v108
    %v149 = vunpack.c.l.b16 %v109
    %v150 = vunpack.c.h.b16 %v109
    %v151 = vunpack.c.l.b16 %v110
    %v152 = vunpack.c.h.b16 %v110
    %v153 = vunpack.c.l.b16 %v111
    %v154 = vunpack.c.h.b16 %v111
    %v155 = vunpack.c.l.b16 %v112
    %v156 = vunpack.c.h.b16 %v112
    %v157 = vunpack.c.l.b16 %v113
    %v158 = vunpack.c.h.b16 %v113
    %v159 = vunpack.c.l.b16 %v114
    %v160 = vunpack.c.h.b16 %v114
    %v161 = vunpack.c.l.b16 %v115
    %v162 = vunpack.c.h.b16 %v115
    %v163 = vunpack.c.l.b16 %v116
    %v164 = vunpack.c.h.b16 %v116
    %v165 = vunpack.c.l.b16 %v117
    %v166 = vunpack.c.h.b16 %v117
    %v167 = vunpack.c.l.b16 %v118
    %v168 = vunpack.c.h.b16 %v118
    %v169 = vpack.c.b16 %v139, %v137
    %v170 = vpack.c.b16 %v140, %v138
    %v171 = vpack.c.b16 %v143, %v141
    %v172 = vpack.c.b16 %v144, %v142
    %v173 = vpack.c.b16 %v147, %v145
    %v174 = vpack.c.b16 %v148, %v146
    %v175 = vpack.c.b16 %v151, %v149
    %v176 = vpack.c.b16 %v152, %v150
    %v177 = vpack.c.b16 %v155, %v153
    %v178 = vpack.c.b16 %v156, %v154
    %v179 = vpack.c.b16 %v159, %v157
    %v180 = vpack.c.b16 %v160, %v158
    %v181 = vpack.c.b16 %v163, %v161
    %v182 = vpack.c.b16 %v164, %v162
    %v183 = vpack.c.b16 %v167, %v165
    %v184 = vpack.c.b16 %v168, %v166
    %201 = vmatpush.bf16.msra.mxu0 %v183
    %202 = vmatpush.bf16.msra.mxu0 %v181
    %203 = vmatpush.bf16.msra.mxu0 %v179
    %204 = vmatpush.bf16.msra.mxu0 %v177
    %205 = vmatpush.bf16.msra.mxu0 %v175
    %206 = vmatpush.bf16.msra.mxu0 %v173
    %207 = vmatpush.bf16.msra.mxu0 %v171
    %208 = vmatpush.bf16.msra.mxu0 %v169
    %209 = vmatmul.bf16.gmra.mxu0 %v102
    %v210 = vpop.f32.mrf.mxu0
    %v211 = vadd.f32 %v120, %v210
    %v212 = vpop.f32.mrf.mxu0
    %213 = vdwg.mxu0
    %214 = vmatpush.bf16.msra.mxu0 %v184
    %215 = vmatpush.bf16.msra.mxu0 %v182
    %216 = vmatpush.bf16.msra.mxu0 %v180
    %217 = vmatpush.bf16.msra.mxu0 %v178
    %218 = vmatpush.bf16.msra.mxu0 %v176
    %219 = vmatpush.bf16.msra.mxu0 %v174
    %220 = vmatpush.bf16.msra.mxu0 %v172
    %221 = vmatpush.bf16.msra.mxu0 %v170
    %222 = vmatmul.bf16.gmra.mxu0 %v102
    %v223 = vpop.f32.mrf.mxu0
    %v224 = vadd.f32 %v120, %v223
    %v225 = vpop.f32.mrf.mxu0
    %226 = vdwg.mxu0
    %v227 = vmax.f32 %v211, 0.0
    %v228 = vmax.f32 %v224, 0.0
    %v229 = vmax.f32 %v227, %v228
    %v230 = vpack.c.bf16 %v229, %v229
    %s231 = scalar_lea.vmem [#allocation6], 128
    %v232 = vld [vmem:[%s231] sm:$0xff]
    %v233 = vld [vmem:[%s231 + $0x8] sm:$0xff]
    %v234 = vld [vmem:[%s231 + $0x10] sm:$0xff]
    %v235 = vld [vmem:[%s231 + $0x18] sm:$0xff]
    %v236 = vld [vmem:[%s231 + $0x20] sm:$0xff]
    %v237 = vld [vmem:[%s231 + $0x28] sm:$0xff]
    %v238 = vld [vmem:[%s231 + $0x30] sm:$0xff]
    %v239 = vld [vmem:[%s231 + $0x38] sm:$0xff]
    %v240 = vld [vmem:[%s231 + $0x40] sm:$0xff]
    %v241 = vld [vmem:[%s231 + $0x48] sm:$0xff]
    %v242 = vld [vmem:[%s231 + $0x50] sm:$0xff]
    %v243 = vld [vmem:[%s231 + $0x58] sm:$0xff]
    %v244 = vld [vmem:[%s231 + $0x60] sm:$0xff]
    %v245 = vld [vmem:[%s231 + $0x68] sm:$0xff]
    %v246 = vld [vmem:[%s231 + $0x70] sm:$0xff]
    %v247 = vld [vmem:[%s231 + $0x78] sm:$0xff]
    %s248 = sld [smem:[#allocation3 + $0x1]]
    %v249 = vstv %s248
    %v266 = vunpack.c.l.b16 %v232
    %v267 = vunpack.c.h.b16 %v232
    %v268 = vunpack.c.l.b16 %v233
    %v269 = vunpack.c.h.b16 %v233
    %v270 = vunpack.c.l.b16 %v234
    %v271 = vunpack.c.h.b16 %v234
    %v272 = vunpack.c.l.b16 %v235
    %v273 = vunpack.c.h.b16 %v235
    %v274 = vunpack.c.l.b16 %v236
    %v275 = vunpack.c.h.b16 %v236
    %v276 = vunpack.c.l.b16 %v237
    %v277 = vunpack.c.h.b16 %v237
    %v278 = vunpack.c.l.b16 %v238
    %v279 = vunpack.c.h.b16 %v238
    %v280 = vunpack.c.l.b16 %v239
    %v281 = vunpack.c.h.b16 %v239
    %v282 = vunpack.c.l.b16 %v240
    %v283 = vunpack.c.h.b16 %v240
    %v284 = vunpack.c.l.b16 %v241
    %v285 = vunpack.c.h.b16 %v241
    %v286 = vunpack.c.l.b16 %v242
    %v287 = vunpack.c.h.b16 %v242
    %v288 = vunpack.c.l.b16 %v243
    %v289 = vunpack.c.h.b16 %v243
    %v290 = vunpack.c.l.b16 %v244
    %v291 = vunpack.c.h.b16 %v244
    %v292 = vunpack.c.l.b16 %v245
    %v293 = vunpack.c.h.b16 %v245
    %v294 = vunpack.c.l.b16 %v246
    %v295 = vunpack.c.h.b16 %v246
    %v296 = vunpack.c.l.b16 %v247
    %v297 = vunpack.c.h.b16 %v247
    %v298 = vpack.c.b16 %v268, %v266
    %v299 = vpack.c.b16 %v269, %v267
    %v300 = vpack.c.b16 %v272, %v270
    %v301 = vpack.c.b16 %v273, %v271
    %v302 = vpack.c.b16 %v276, %v274
    %v303 = vpack.c.b16 %v277, %v275
    %v304 = vpack.c.b16 %v280, %v278
    %v305 = vpack.c.b16 %v281, %v279
    %v306 = vpack.c.b16 %v284, %v282
    %v307 = vpack.c.b16 %v285, %v283
    %v308 = vpack.c.b16 %v288, %v286
    %v309 = vpack.c.b16 %v289, %v287
    %v310 = vpack.c.b16 %v292, %v290
    %v311 = vpack.c.b16 %v293, %v291
    %v312 = vpack.c.b16 %v296, %v294
    %v313 = vpack.c.b16 %v297, %v295
    %330 = vmatpush.bf16.msra.mxu0 %v312
    %331 = vmatpush.bf16.msra.mxu0 %v310
    %332 = vmatpush.bf16.msra.mxu0 %v308
    %333 = vmatpush.bf16.msra.mxu0 %v306
    %334 = vmatpush.bf16.msra.mxu0 %v304
    %335 = vmatpush.bf16.msra.mxu0 %v302
    %336 = vmatpush.bf16.msra.mxu0 %v300
    %337 = vmatpush.bf16.msra.mxu0 %v298
    %338 = vmatmul.bf16.gmra.mxu0 %v230
    %v339 = vpop.f32.mrf.mxu0
    %v340 = vadd.f32 %v249, %v339
    %v341 = vpop.f32.mrf.mxu0
    %342 = vdwg.mxu0
    %343 = vmatpush.bf16.msra.mxu0 %v313
    %344 = vmatpush.bf16.msra.mxu0 %v311
    %345 = vmatpush.bf16.msra.mxu0 %v309
    %346 = vmatpush.bf16.msra.mxu0 %v307
    %347 = vmatpush.bf16.msra.mxu0 %v305
    %348 = vmatpush.bf16.msra.mxu0 %v303
    %349 = vmatpush.bf16.msra.mxu0 %v301
    %350 = vmatpush.bf16.msra.mxu0 %v299
    %351 = vmatmul.bf16.gmra.mxu0 %v230
    %v352 = vpop.f32.mrf.mxu0
    %v353 = vadd.f32 %v249, %v352
    %v354 = vpop.f32.mrf.mxu0
    %355 = vdwg.mxu0
    %v356 = vmax.f32 %v340, 0.0
    %v357 = vmax.f32 %v353, 0.0
    %v358 = vmax.f32 %v356, %v357
    %v359 = vpack.c.bf16 %v358, %v358
    %s360 = scalar_lea.vmem [#allocation6], 256
    %v361 = vld [vmem:[%s360] sm:$0xff]
    %v362 = vld [vmem:[%s360 + $0x8] sm:$0xff]
    %v363 = vld [vmem:[%s360 + $0x10] sm:$0xff]
    %v364 = vld [vmem:[%s360 + $0x18] sm:$0xff]
    %v365 = vld [vmem:[%s360 + $0x20] sm:$0xff]
    %v366 = vld [vmem:[%s360 + $0x28] sm:$0xff]
    %v367 = vld [vmem:[%s360 + $0x30] sm:$0xff]
    %v368 = vld [vmem:[%s360 + $0x38] sm:$0xff]
    %v369 = vld [vmem:[%s360 + $0x40] sm:$0xff]
    %v370 = vld [vmem:[%s360 + $0x48] sm:$0xff]
    %v371 = vld [vmem:[%s360 + $0x50] sm:$0xff]
    %v372 = vld [vmem:[%s360 + $0x58] sm:$0xff]
    %v373 = vld [vmem:[%s360 + $0x60] sm:$0xff]
    %v374 = vld [vmem:[%s360 + $0x68] sm:$0xff]
    %v375 = vld [vmem:[%s360 + $0x70] sm:$0xff]
    %v376 = vld [vmem:[%s360 + $0x78] sm:$0xff]
    %s377 = sld [smem:[#allocation3 + $0x2]]
    %v378 = vstv %s377
    %v395 = vunpack.c.l.b16 %v361
    %v396 = vunpack.c.h.b16 %v361
    %v397 = vunpack.c.l.b16 %v362
    %v398 = vunpack.c.h.b16 %v362
    %v399 = vunpack.c.l.b16 %v363
    %v400 = vunpack.c.h.b16 %v363
    %v401 = vunpack.c.l.b16 %v364
    %v402 = vunpack.c.h.b16 %v364
    %v403 = vunpack.c.l.b16 %v365
    %v404 = vunpack.c.h.b16 %v365
    %v405 = vunpack.c.l.b16 %v366
    %v406 = vunpack.c.h.b16 %v366
    %v407 = vunpack.c.l.b16 %v367
    %v408 = vunpack.c.h.b16 %v367
    %v409 = vunpack.c.l.b16 %v368
    %v410 = vunpack.c.h.b16 %v368
    %v411 = vunpack.c.l.b16 %v369
    %v412 = vunpack.c.h.b16 %v369
    %v413 = vunpack.c.l.b16 %v370
    %v414 = vunpack.c.h.b16 %v370
    %v415 = vunpack.c.l.b16 %v371
    %v416 = vunpack.c.h.b16 %v371
    %v417 = vunpack.c.l.b16 %v372
    %v418 = vunpack.c.h.b16 %v372
    %v419 = vunpack.c.l.b16 %v373
    %v420 = vunpack.c.h.b16 %v373
    %v421 = vunpack.c.l.b16 %v374
    %v422 = vunpack.c.h.b16 %v374
    %v423 = vunpack.c.l.b16 %v375
    %v424 = vunpack.c.h.b16 %v375
    %v425 = vunpack.c.l.b16 %v376
    %v426 = vunpack.c.h.b16 %v376
    %v427 = vpack.c.b16 %v397, %v395
    %v428 = vpack.c.b16 %v398, %v396
    %v429 = vpack.c.b16 %v401, %v399
    %v430 = vpack.c.b16 %v402, %v400
    %v431 = vpack.c.b16 %v405, %v403
    %v432 = vpack.c.b16 %v406, %v404
    %v433 = vpack.c.b16 %v409, %v407
    %v434 = vpack.c.b16 %v410, %v408
    %v435 = vpack.c.b16 %v413, %v411
    %v436 = vpack.c.b16 %v414, %v412
    %v437 = vpack.c.b16 %v417, %v415
    %v438 = vpack.c.b16 %v418, %v416
    %v439 = vpack.c.b16 %v421, %v419
    %v440 = vpack.c.b16 %v422, %v420
    %v441 = vpack.c.b16 %v425, %v423
    %v442 = vpack.c.b16 %v426, %v424
    %459 = vmatpush.bf16.msra.mxu0 %v441
    %460 = vmatpush.bf16.msra.mxu0 %v439
    %461 = vmatpush.bf16.msra.mxu0 %v437
    %462 = vmatpush.bf16.msra.mxu0 %v435
    %463 = vmatpush.bf16.msra.mxu0 %v433
    %464 = vmatpush.bf16.msra.mxu0 %v431
    %465 = vmatpush.bf16.msra.mxu0 %v429
    %466 = vmatpush.bf16.msra.mxu0 %v427
    %467 = vmatmul.bf16.gmra.mxu0 %v359
    %v468 = vpop.f32.mrf.mxu0
    %v469 = vadd.f32 %v378, %v468
    %v470 = vpop.f32.mrf.mxu0
    %471 = vdwg.mxu0
    %472 = vmatpush.bf16.msra.mxu0 %v442
    %473 = vmatpush.bf16.msra.mxu0 %v440
    %474 = vmatpush.bf16.msra.mxu0 %v438
    %475 = vmatpush.bf16.msra.mxu0 %v436
    %476 = vmatpush.bf16.msra.mxu0 %v434
    %477 = vmatpush.bf16.msra.mxu0 %v432
    %478 = vmatpush.bf16.msra.mxu0 %v430
    %479 = vmatpush.bf16.msra.mxu0 %v428
    %480 = vmatmul.bf16.gmra.mxu0 %v359
    %v481 = vpop.f32.mrf.mxu0
    %v482 = vadd.f32 %v378, %v481
    %v483 = vpop.f32.mrf.mxu0
    %484 = vdwg.mxu0
    %v485 = vmax.f32 %v469, 0.0
    %v486 = vmax.f32 %v482, 0.0
    %v487 = vmax.f32 %v485, %v486
    %v488 = vpack.c.bf16 %v487, %v487
    %s489 = scalar_lea.vmem [#allocation6], 384
    %v490 = vld [vmem:[%s489] sm:$0xff]
    %v491 = vld [vmem:[%s489 + $0x8] sm:$0xff]
    %v492 = vld [vmem:[%s489 + $0x10] sm:$0xff]
    %v493 = vld [vmem:[%s489 + $0x18] sm:$0xff]
    %v494 = vld [vmem:[%s489 + $0x20] sm:$0xff]
    %v495 = vld [vmem:[%s489 + $0x28] sm:$0xff]
    %v496 = vld [vmem:[%s489 + $0x30] sm:$0xff]
    %v497 = vld [vmem:[%s489 + $0x38] sm:$0xff]
    %v498 = vld [vmem:[%s489 + $0x40] sm:$0xff]
    %v499 = vld [vmem:[%s489 + $0x48] sm:$0xff]
    %v500 = vld [vmem:[%s489 + $0x50] sm:$0xff]
    %v501 = vld [vmem:[%s489 + $0x58] sm:$0xff]
    %v502 = vld [vmem:[%s489 + $0x60] sm:$0xff]
    %v503 = vld [vmem:[%s489 + $0x68] sm:$0xff]
    %v504 = vld [vmem:[%s489 + $0x70] sm:$0xff]
    %v505 = vld [vmem:[%s489 + $0x78] sm:$0xff]
    %s506 = sld [smem:[#allocation3 + $0x3]]
    %v507 = vstv %s506
    %v524 = vunpack.c.l.b16 %v490
    %v525 = vunpack.c.h.b16 %v490
    %v526 = vunpack.c.l.b16 %v491
    %v527 = vunpack.c.h.b16 %v491
    %v528 = vunpack.c.l.b16 %v492
    %v529 = vunpack.c.h.b16 %v492
    %v530 = vunpack.c.l.b16 %v493
    %v531 = vunpack.c.h.b16 %v493
    %v532 = vunpack.c.l.b16 %v494
    %v533 = vunpack.c.h.b16 %v494
    %v534 = vunpack.c.l.b16 %v495
    %v535 = vunpack.c.h.b16 %v495
    %v536 = vunpack.c.l.b16 %v496
    %v537 = vunpack.c.h.b16 %v496
    %v538 = vunpack.c.l.b16 %v497
    %v539 = vunpack.c.h.b16 %v497
    %v540 = vunpack.c.l.b16 %v498
    %v541 = vunpack.c.h.b16 %v498
    %v542 = vunpack.c.l.b16 %v499
    %v543 = vunpack.c.h.b16 %v499
    %v544 = vunpack.c.l.b16 %v500
    %v545 = vunpack.c.h.b16 %v500
    %v546 = vunpack.c.l.b16 %v501
    %v547 = vunpack.c.h.b16 %v501
    %v548 = vunpack.c.l.b16 %v502
    %v549 = vunpack.c.h.b16 %v502
    %v550 = vunpack.c.l.b16 %v503
    %v551 = vunpack.c.h.b16 %v503
    %v552 = vunpack.c.l.b16 %v504
    %v553 = vunpack.c.h.b16 %v504
    %v554 = vunpack.c.l.b16 %v505
    %v555 = vunpack.c.h.b16 %v505
    %v556 = vpack.c.b16 %v526, %v524
    %v557 = vpack.c.b16 %v527, %v525
    %v558 = vpack.c.b16 %v530, %v528
    %v559 = vpack.c.b16 %v531, %v529
    %v560 = vpack.c.b16 %v534, %v532
    %v561 = vpack.c.b16 %v535, %v533
    %v562 = vpack.c.b16 %v538, %v536
    %v563 = vpack.c.b16 %v539, %v537
    %v564 = vpack.c.b16 %v542, %v540
    %v565 = vpack.c.b16 %v543, %v541
    %v566 = vpack.c.b16 %v546, %v544
    %v567 = vpack.c.b16 %v547, %v545
    %v568 = vpack.c.b16 %v550, %v548
    %v569 = vpack.c.b16 %v551, %v549
    %v570 = vpack.c.b16 %v554, %v552
    %v571 = vpack.c.b16 %v555, %v553
    %588 = vmatpush.bf16.msra.mxu0 %v570
    %589 = vmatpush.bf16.msra.mxu0 %v568
    %590 = vmatpush.bf16.msra.mxu0 %v566
    %591 = vmatpush.bf16.msra.mxu0 %v564
    %592 = vmatpush.bf16.msra.mxu0 %v562
    %593 = vmatpush.bf16.msra.mxu0 %v560
    %594 = vmatpush.bf16.msra.mxu0 %v558
    %595 = vmatpush.bf16.msra.mxu0 %v556
    %596 = vmatmul.bf16.gmra.mxu0 %v488
    %v597 = vpop.f32.mrf.mxu0
    %v598 = vadd.f32 %v507, %v597
    %v599 = vpop.f32.mrf.mxu0
    %600 = vdwg.mxu0
    %601 = vmatpush.bf16.msra.mxu0 %v571
    %602 = vmatpush.bf16.msra.mxu0 %v569
    %603 = vmatpush.bf16.msra.mxu0 %v567
    %604 = vmatpush.bf16.msra.mxu0 %v565
    %605 = vmatpush.bf16.msra.mxu0 %v563
    %606 = vmatpush.bf16.msra.mxu0 %v561
    %607 = vmatpush.bf16.msra.mxu0 %v559
    %608 = vmatpush.bf16.msra.mxu0 %v557
    %609 = vmatmul.bf16.gmra.mxu0 %v488
    %v610 = vpop.f32.mrf.mxu0
    %v611 = vadd.f32 %v507, %v610
    %v612 = vpop.f32.mrf.mxu0
    %613 = vdwg.mxu0
    %v614 = vmax.f32 %v598, 0.0
    %v615 = vmax.f32 %v611, 0.0
    %v616 = vmax.f32 %v614, %v615
    %v617 = vld [vmem:[#allocation9] ss:$4 sm:$0xf]
    %s618 = scalar_lea.vmem [#allocation9], 1
    %v619 = vld [vmem:[%s618] ss:$4 sm:$0xf]
    %v620 = vperm.slane %v616, 0
    %v621 = vlaneseq
    %v622 = vshrl.u32 %v621, 7
    %624 = vset.pattern.permute.xlu0 %v622
    %625 = vperm.xlu0 %624, %v620
    %v626 = vpop.permute.xlu0 %625
    %v627 = vlaneseq
    %v628 = vshrl.u32 %v627, 7
    %v629 = vadd.s32 %v628, 8
    %630 = vset.pattern.permute.xlu0 %v629
    %631 = vperm.xlu0 %630, %v620
    %v632 = vpop.permute.xlu0 %631
    %v633 = vperm.slane %v616, 1
    %v634 = vlaneseq
    %v635 = vshrl.u32 %v634, 7
    %637 = vset.pattern.permute.xlu0 %v635
    %638 = vperm.xlu0 %637, %v633
    %v639 = vpop.permute.xlu0 %638
    %v640 = vlaneseq
    %v641 = vshrl.u32 %v640, 7
    %v642 = vadd.s32 %v641, 8
    %643 = vset.pattern.permute.xlu0 %v642
    %644 = vperm.xlu0 %643, %v633
    %v645 = vpop.permute.xlu0 %644
    %v647 = vperm.slane %v617, 0
    %v648 = vperm.slane %v617, 1
    %v649 = vperm.slane %v617, 2
    %v650 = vperm.slane %v617, 3
    %v655 = vmul.f32 %v626, %v647
    %v656 = vmul.f32 %v626, %v648
    %v657 = vmul.f32 %v626, %v649
    %v658 = vmul.f32 %v626, %v650
    %v659 = vmul.f32 %v632, %v647
    %v660 = vmul.f32 %v632, %v648
    %v661 = vmul.f32 %v632, %v649
    %v662 = vmul.f32 %v632, %v650
    %v663 = vmul.f32 %v639, %v647
    %v664 = vmul.f32 %v639, %v648
    %v665 = vmul.f32 %v639, %v649
    %v666 = vmul.f32 %v639, %v650
    %v667 = vmul.f32 %v645, %v647
    %v668 = vmul.f32 %v645, %v648
    %v669 = vmul.f32 %v645, %v649
    %v670 = vmul.f32 %v645, %v650
    %v672 = vperm.slane %v619, 0
    %v673 = vperm.slane %v619, 1
    %v674 = vperm.slane %v619, 2
    %v675 = vperm.slane %v619, 3
    %v680 = vadd.f32 %v655, %v672
    %v681 = vadd.f32 %v656, %v673
    %v682 = vadd.f32 %v657, %v674
    %v683 = vadd.f32 %v658, %v675
    %v684 = vadd.f32 %v659, %v672
    %v685 = vadd.f32 %v660, %v673
    %v686 = vadd.f32 %v661, %v674
    %v687 = vadd.f32 %v662, %v675
    %v688 = vadd.f32 %v663, %v672
    %v689 = vadd.f32 %v664, %v673
    %v690 = vadd.f32 %v665, %v674
    %v691 = vadd.f32 %v666, %v675
    %v692 = vadd.f32 %v667, %v672
    %v693 = vadd.f32 %v668, %v673
    %v694 = vadd.f32 %v669, %v674
    %v695 = vadd.f32 %v670, %v675
    %696 = vst [vmem:[#allocation2] sm:$0xff] %v680
    %697 = vst [vmem:[#allocation2 + $0x8] sm:$0xff] %v681
    %698 = vst [vmem:[#allocation2 + $0x10] sm:$0xff] %v682
    %699 = vst [vmem:[#allocation2 + $0x18] sm:$0xff] %v683
    %700 = vst [vmem:[#allocation2 + $0x20] sm:$0x3] %v684
    %701 = vst [vmem:[#allocation2 + $0x28] sm:$0x3] %v685
    %702 = vst [vmem:[#allocation2 + $0x30] sm:$0x3] %v686
    %703 = vst [vmem:[#allocation2 + $0x38] sm:$0x3] %v687
    %704 = vst [vmem:[#allocation2 + $0x40] sm:$0xff] %v688
    %705 = vst [vmem:[#allocation2 + $0x48] sm:$0xff] %v689
    %706 = vst [vmem:[#allocation2 + $0x50] sm:$0xff] %v690
    %707 = vst [vmem:[#allocation2 + $0x58] sm:$0xff] %v691
    %708 = vst [vmem:[#allocation2 + $0x60] sm:$0x3] %v692
    %709 = vst [vmem:[#allocation2 + $0x68] sm:$0x3] %v693
    %710 = vst [vmem:[#allocation2 + $0x70] sm:$0x3] %v694
    %711 = vst [vmem:[#allocation2 + $0x78] sm:$0x3] %v695
    %v712 = vld [vmem:[#allocation2] ss:$8 sm:$0xf]
    %s713 = scalar_lea.vmem [#allocation2], 64
    %v714 = vld [vmem:[%s713] ss:$8 sm:$0xf]
    %v715 = vld [vmem:[#allocation7] sm:$0xff]
    %v716 = vld [vmem:[#allocation7 + $0x8] sm:$0xff]
    %v717 = vld [vmem:[#allocation7 + $0x10] sm:$0xff]
    %v718 = vld [vmem:[#allocation7 + $0x18] sm:$0xff]
    %v719 = vld [vmem:[#allocation7 + $0x20] sm:$0xff]
    %v720 = vld [vmem:[#allocation7 + $0x28] sm:$0xff]
    %v721 = vld [vmem:[#allocation7 + $0x30] sm:$0xff]
    %v722 = vld [vmem:[#allocation7 + $0x38] sm:$0xff]
    %v723 = vld [vmem:[#allocation7 + $0x40] sm:$0xff]
    %v724 = vld [vmem:[#allocation7 + $0x48] sm:$0xff]
    %v725 = vld [vmem:[#allocation7 + $0x50] sm:$0xff]
    %v726 = vld [vmem:[#allocation7 + $0x58] sm:$0xff]
    %v727 = vld [vmem:[#allocation7 + $0x60] sm:$0xff]
    %v728 = vld [vmem:[#allocation7 + $0x68] sm:$0xff]
    %v729 = vld [vmem:[#allocation7 + $0x70] sm:$0xff]
    %v730 = vld [vmem:[#allocation7 + $0x78] sm:$0xff]
    %v731 = vld [vmem:[#allocation7 + $0x80] sm:$0xff]
    %v732 = vld [vmem:[#allocation7 + $0x88] sm:$0xff]
    %v733 = vld [vmem:[#allocation7 + $0x90] sm:$0xff]
    %v734 = vld [vmem:[#allocation7 + $0x98] sm:$0xff]
    %v735 = vld [vmem:[#allocation7 + $0xa0] sm:$0xff]
    %v736 = vld [vmem:[#allocation7 + $0xa8] sm:$0xff]
    %v737 = vld [vmem:[#allocation7 + $0xb0] sm:$0xff]
    %v738 = vld [vmem:[#allocation7 + $0xb8] sm:$0xff]
    %v739 = vld [vmem:[#allocation7 + $0xc0] sm:$0xff]
    %v740 = vld [vmem:[#allocation7 + $0xc8] sm:$0xff]
    %v741 = vld [vmem:[#allocation7 + $0xd0] sm:$0xff]
    %v742 = vld [vmem:[#allocation7 + $0xd8] sm:$0xff]
    %v743 = vld [vmem:[#allocation7 + $0xe0] sm:$0xff]
    %v744 = vld [vmem:[#allocation7 + $0xe8] sm:$0xff]
    %v745 = vld [vmem:[#allocation7 + $0xf0] sm:$0xff]
    %v746 = vld [vmem:[#allocation7 + $0xf8] sm:$0xff]
    %v779 = vunpack.c.l.b16 %v715
    %v780 = vunpack.c.h.b16 %v715
    %v781 = vunpack.c.l.b16 %v716
    %v782 = vunpack.c.h.b16 %v716
    %v783 = vunpack.c.l.b16 %v717
    %v784 = vunpack.c.h.b16 %v717
    %v785 = vunpack.c.l.b16 %v718
    %v786 = vunpack.c.h.b16 %v718
    %v787 = vunpack.c.l.b16 %v719
    %v788 = vunpack.c.h.b16 %v719
    %v789 = vunpack.c.l.b16 %v720
    %v790 = vunpack.c.h.b16 %v720
    %v791 = vunpack.c.l.b16 %v721
    %v792 = vunpack.c.h.b16 %v721
    %v793 = vunpack.c.l.b16 %v722
    %v794 = vunpack.c.h.b16 %v722
    %v795 = vunpack.c.l.b16 %v723
    %v796 = vunpack.c.h.b16 %v723
    %v797 = vunpack.c.l.b16 %v724
    %v798 = vunpack.c.h.b16 %v724
    %v799 = vunpack.c.l.b16 %v725
    %v800 = vunpack.c.h.b16 %v725
    %v801 = vunpack.c.l.b16 %v726
    %v802 = vunpack.c.h.b16 %v726
    %v803 = vunpack.c.l.b16 %v727
    %v804 = vunpack.c.h.b16 %v727
    %v805 = vunpack.c.l.b16 %v728
    %v806 = vunpack.c.h.b16 %v728
    %v807 = vunpack.c.l.b16 %v729
    %v808 = vunpack.c.h.b16 %v729
    %v809 = vunpack.c.l.b16 %v730
    %v810 = vunpack.c.h.b16 %v730
    %v811 = vunpack.c.l.b16 %v731
    %v812 = vunpack.c.h.b16 %v731
    %v813 = vunpack.c.l.b16 %v732
    %v814 = vunpack.c.h.b16 %v732
    %v815 = vunpack.c.l.b16 %v733
    %v816 = vunpack.c.h.b16 %v733
    %v817 = vunpack.c.l.b16 %v734
    %v818 = vunpack.c.h.b16 %v734
    %v819 = vunpack.c.l.b16 %v735
    %v820 = vunpack.c.h.b16 %v735
    %v821 = vunpack.c.l.b16 %v736
    %v822 = vunpack.c.h.b16 %v736
    %v823 = vunpack.c.l.b16 %v737
    %v824 = vunpack.c.h.b16 %v737
    %v825 = vunpack.c.l.b16 %v738
    %v826 = vunpack.c.h.b16 %v738
    %v827 = vunpack.c.l.b16 %v739
    %v828 = vunpack.c.h.b16 %v739
    %v829 = vunpack.c.l.b16 %v740
    %v830 = vunpack.c.h.b16 %v740
    %v831 = vunpack.c.l.b16 %v741
    %v832 = vunpack.c.h.b16 %v741
    %v833 = vunpack.c.l.b16 %v742
    %v834 = vunpack.c.h.b16 %v742
    %v835 = vunpack.c.l.b16 %v743
    %v836 = vunpack.c.h.b16 %v743
    %v837 = vunpack.c.l.b16 %v744
    %v838 = vunpack.c.h.b16 %v744
    %v839 = vunpack.c.l.b16 %v745
    %v840 = vunpack.c.h.b16 %v745
    %v841 = vunpack.c.l.b16 %v746
    %v842 = vunpack.c.h.b16 %v746
    %v843 = vpack.c.b16 %v783, %v779
    %v844 = vpack.c.b16 %v784, %v780
    %v845 = vpack.c.b16 %v785, %v781
    %v846 = vpack.c.b16 %v786, %v782
    %v847 = vpack.c.b16 %v791, %v787
    %v848 = vpack.c.b16 %v792, %v788
    %v849 = vpack.c.b16 %v793, %v789
    %v850 = vpack.c.b16 %v794, %v790
    %v851 = vpack.c.b16 %v799, %v795
    %v852 = vpack.c.b16 %v800, %v796
    %v853 = vpack.c.b16 %v801, %v797
    %v854 = vpack.c.b16 %v802, %v798
    %v855 = vpack.c.b16 %v807, %v803
    %v856 = vpack.c.b16 %v808, %v804
    %v857 = vpack.c.b16 %v809, %v805
    %v858 = vpack.c.b16 %v810, %v806
    %v859 = vpack.c.b16 %v815, %v811
    %v860 = vpack.c.b16 %v816, %v812
    %v861 = vpack.c.b16 %v817, %v813
    %v862 = vpack.c.b16 %v818, %v814
    %v863 = vpack.c.b16 %v823, %v819
    %v864 = vpack.c.b16 %v824, %v820
    %v865 = vpack.c.b16 %v825, %v821
    %v866 = vpack.c.b16 %v826, %v822
    %v867 = vpack.c.b16 %v831, %v827
    %v868 = vpack.c.b16 %v832, %v828
    %v869 = vpack.c.b16 %v833, %v829
    %v870 = vpack.c.b16 %v834, %v830
    %v871 = vpack.c.b16 %v839, %v835
    %v872 = vpack.c.b16 %v840, %v836
    %v873 = vpack.c.b16 %v841, %v837
    %v874 = vpack.c.b16 %v842, %v838
    %909 = vst [vmem:[#allocation1] ss:$9 sm:$0xff] %v712
    %s910 = scalar_lea.vmem [#allocation1], 1
    %911 = vst [vmem:[%s910] ss:$9 sm:$0xff] %v714
    %v912 = vld [vmem:[#allocation1] sm:$0xff]
    %v913 = vld [vmem:[#allocation1 + $0x9] sm:$0xff]
    %v914 = vld [vmem:[#allocation1 + $0x12] sm:$0xff]
    %v915 = vld [vmem:[#allocation1 + $0x1b] sm:$0xff]
    %920 = vmatpush.bf16.msra.mxu0 %v871
    %921 = vmatpush.bf16.msra.mxu0 %v867
    %922 = vmatpush.bf16.msra.mxu0 %v863
    %923 = vmatpush.bf16.msra.mxu0 %v859
    %924 = vmatpush.bf16.msra.mxu0 %v855
    %925 = vmatpush.bf16.msra.mxu0 %v851
    %926 = vmatpush.bf16.msra.mxu0 %v847
    %927 = vmatpush.bf16.msra.mxu0 %v843
    %928 = vmatmul.bf16.gmra.mxu0 0
    %v929 = vpop.f32.mrf.mxu0
    %v930 = vadd.f32 %v912, %v929
    %v931 = vpop.f32.mrf.mxu0
    %932 = vdwg.mxu0
    %933 = vmatpush.bf16.msra.mxu0 %v872
    %934 = vmatpush.bf16.msra.mxu0 %v868
    %935 = vmatpush.bf16.msra.mxu0 %v864
    %936 = vmatpush.bf16.msra.mxu0 %v860
    %937 = vmatpush.bf16.msra.mxu0 %v856
    %938 = vmatpush.bf16.msra.mxu0 %v852
    %939 = vmatpush.bf16.msra.mxu0 %v848
    %940 = vmatpush.bf16.msra.mxu0 %v844
    %941 = vmatmul.bf16.gmra.mxu0 0
    %v942 = vpop.f32.mrf.mxu0
    %v943 = vadd.f32 %v913, %v942
    %v944 = vpop.f32.mrf.mxu0
    %945 = vdwg.mxu0
    %946 = vmatpush.bf16.msra.mxu0 %v873
    %947 = vmatpush.bf16.msra.mxu0 %v869
    %948 = vmatpush.bf16.msra.mxu0 %v865
    %949 = vmatpush.bf16.msra.mxu0 %v861
    %950 = vmatpush.bf16.msra.mxu0 %v857
    %951 = vmatpush.bf16.msra.mxu0 %v853
    %952 = vmatpush.bf16.msra.mxu0 %v849
    %953 = vmatpush.bf16.msra.mxu0 %v845
    %954 = vmatmul.bf16.gmra.mxu0 0
    %v955 = vpop.f32.mrf.mxu0
    %v956 = vadd.f32 %v914, %v955
    %v957 = vpop.f32.mrf.mxu0
    %958 = vdwg.mxu0
    %959 = vmatpush.bf16.msra.mxu0 %v874
    %960 = vmatpush.bf16.msra.mxu0 %v870
    %961 = vmatpush.bf16.msra.mxu0 %v866
    %962 = vmatpush.bf16.msra.mxu0 %v862
    %963 = vmatpush.bf16.msra.mxu0 %v858
    %964 = vmatpush.bf16.msra.mxu0 %v854
    %965 = vmatpush.bf16.msra.mxu0 %v850
    %966 = vmatpush.bf16.msra.mxu0 %v846
    %967 = vmatmul.bf16.gmra.mxu0 0
    %v968 = vpop.f32.mrf.mxu0
    %v969 = vadd.f32 %v915, %v968
    %v970 = vpop.f32.mrf.mxu0
    %971 = vdwg.mxu0
    %v972 = vtanh.pop %v930
    %v973 = vtanh.pop %v943
    %v974 = vtanh.pop %v956
    %v975 = vtanh.pop %v969
    %v976 = vmul.f32 %v972, 0.5
    %v977 = vadd.f32 %v976, 0.5
    %v978 = vmul.f32 %v973, 0.5
    %v979 = vadd.f32 %v978, 0.5
    %v980 = vmul.f32 %v975, 0.5
    %v981 = vadd.f32 %v980, 0.5
    %v982 = vmul.f32 %v979, 0.0
    %v983 = vmul.f32 %v977, %v974
    %v984 = vadd.f32 %v982, %v983
    %v985 = vtanh.pop %v984
    %v986 = vmul.f32 %v981, %v985
    %s987 = scalar_lea.vmem [#allocation2], 1
    %v988 = vld [vmem:[%s987] ss:$8 sm:$0xf]
    %s989 = scalar_lea.vmem [#allocation2], 65
    %v990 = vld [vmem:[%s989] ss:$8 sm:$0xf]
    %v991 = vpack.c.bf16 %v986, %v986
    %994 = vst [vmem:[#allocation1] ss:$9 sm:$0xff] %v988
    %s995 = scalar_lea.vmem [#allocation1], 1
    %996 = vst [vmem:[%s995] ss:$9 sm:$0xff] %v990
    %v997 = vld [vmem:[#allocation1] sm:$0xff]
    %v998 = vld [vmem:[#allocation1 + $0x9] sm:$0xff]
    %v999 = vld [vmem:[#allocation1 + $0x12] sm:$0xff]
    %v1000 = vld [vmem:[#allocation1 + $0x1b] sm:$0xff]
    %1005 = vmatpush.bf16.msra.mxu0 %v871
    %1006 = vmatpush.bf16.msra.mxu0 %v867
    %1007 = vmatpush.bf16.msra.mxu0 %v863
    %1008 = vmatpush.bf16.msra.mxu0 %v859
    %1009 = vmatpush.bf16.msra.mxu0 %v855
    %1010 = vmatpush.bf16.msra.mxu0 %v851
    %1011 = vmatpush.bf16.msra.mxu0 %v847
    %1012 = vmatpush.bf16.msra.mxu0 %v843
    %1013 = vmatmul.bf16.gmra.mxu0 %v991
    %v1014 = vpop.f32.mrf.mxu0
    %v1015 = vadd.f32 %v997, %v1014
    %v1016 = vpop.f32.mrf.mxu0
    %1017 = vdwg.mxu0
    %1018 = vmatpush.bf16.msra.mxu0 %v872
    %1019 = vmatpush.bf16.msra.mxu0 %v868
    %1020 = vmatpush.bf16.msra.mxu0 %v864
    %1021 = vmatpush.bf16.msra.mxu0 %v860
    %1022 = vmatpush.bf16.msra.mxu0 %v856
    %1023 = vmatpush.bf16.msra.mxu0 %v852
    %1024 = vmatpush.bf16.msra.mxu0 %v848
    %1025 = vmatpush.bf16.msra.mxu0 %v844
    %1026 = vmatmul.bf16.gmra.mxu0 %v991
    %v1027 = vpop.f32.mrf.mxu0
    %v1028 = vadd.f32 %v998, %v1027
    %v1029 = vpop.f32.mrf.mxu0
    %1030 = vdwg.mxu0
    %1031 = vmatpush.bf16.msra.mxu0 %v873
    %1032 = vmatpush.bf16.msra.mxu0 %v869
    %1033 = vmatpush.bf16.msra.mxu0 %v865
    %1034 = vmatpush.bf16.msra.mxu0 %v861
    %1035 = vmatpush.bf16.msra.mxu0 %v857
    %1036 = vmatpush.bf16.msra.mxu0 %v853
    %1037 = vmatpush.bf16.msra.mxu0 %v849
    %1038 = vmatpush.bf16.msra.mxu0 %v845
    %1039 = vmatmul.bf16.gmra.mxu0 %v991
    %v1040 = vpop.f32.mrf.mxu0
    %v1041 = vadd.f32 %v999, %v1040
    %v1042 = vpop.f32.mrf.mxu0
    %1043 = vdwg.mxu0
    %1044 = vmatpush.bf16.msra.mxu0 %v874
    %1045 = vmatpush.bf16.msra.mxu0 %v870
    %1046 = vmatpush.bf16.msra.mxu0 %v866
    %1047 = vmatpush.bf16.msra.mxu0 %v862
    %1048 = vmatpush.bf16.msra.mxu0 %v858
    %1049 = vmatpush.bf16.msra.mxu0 %v854
    %1050 = vmatpush.bf16.msra.mxu0 %v850
    %1051 = vmatpush.bf16.msra.mxu0 %v846
    %1052 = vmatmul.bf16.gmra.mxu0 %v991
    %v1053 = vpop.f32.mrf.mxu0
    %v1054 = vadd.f32 %v1000, %v1053
    %v1055 = vpop.f32.mrf.mxu0
    %1056 = vdwg.mxu0
    %v1057 = vtanh.pop %v1015
    %v1058 = vtanh.pop %v1028
    %v1059 = vtanh.pop %v1041
    %v1060 = vtanh.pop %v1054
    %v1061 = vmul.f32 %v1057, 0.5
    %v1062 = vadd.f32 %v1061, 0.5
    %v1063 = vmul.f32 %v1058, 0.5
    %v1064 = vadd.f32 %v1063, 0.5
    %v1065 = vmul.f32 %v1060, 0.5
    %v1066 = vadd.f32 %v1065, 0.5
    %v1067 = vmul.f32 %v1064, %v984
    %v1068 = vmul.f32 %v1062, %v1059
    %v1069 = vadd.f32 %v1067, %v1068
    %v1070 = vtanh.pop %v1069
    %v1071 = vmul.f32 %v1066, %v1070
    %s1072 = scalar_lea.vmem [#allocation2], 2
    %v1073 = vld [vmem:[%s1072] ss:$8 sm:$0xf]
    %s1074 = scalar_lea.vmem [#allocation2], 66
    %v1075 = vld [vmem:[%s1074] ss:$8 sm:$0xf]
    %v1076 = vpack.c.bf16 %v1071, %v1071
    %1079 = vst [vmem:[#allocation1] ss:$9 sm:$0xff] %v1073
    %s1080 = scalar_lea.vmem [#allocation1], 1
    %1081 = vst [vmem:[%s1080] ss:$9 sm:$0xff] %v1075
    %v1082 = vld [vmem:[#allocation1] sm:$0xff]
    %v1083 = vld [vmem:[#allocation1 + $0x9] sm:$0xff]
    %v1084 = vld [vmem:[#allocation1 + $0x12] sm:$0xff]
    %v1085 = vld [vmem:[#allocation1 + $0x1b] sm:$0xff]
    %1090 = vmatpush.bf16.msra.mxu0 %v871
    %1091 = vmatpush.bf16.msra.mxu0 %v867
    %1092 = vmatpush.bf16.msra.mxu0 %v863
    %1093 = vmatpush.bf16.msra.mxu0 %v859
    %1094 = vmatpush.bf16.msra.mxu0 %v855
    %1095 = vmatpush.bf16.msra.mxu0 %v851
    %1096 = vmatpush.bf16.msra.mxu0 %v847
    %1097 = vmatpush.bf16.msra.mxu0 %v843
    %1098 = vmatmul.bf16.gmra.mxu0 %v1076
    %v1099 = vpop.f32.mrf.mxu0
    %v1100 = vadd.f32 %v1082, %v1099
    %v1101 = vpop.f32.mrf.mxu0
    %1102 = vdwg.mxu0
    %1103 = vmatpush.bf16.msra.mxu0 %v872
    %1104 = vmatpush.bf16.msra.mxu0 %v868
    %1105 = vmatpush.bf16.msra.mxu0 %v864
    %1106 = vmatpush.bf16.msra.mxu0 %v860
    %1107 = vmatpush.bf16.msra.mxu0 %v856
    %1108 = vmatpush.bf16.msra.mxu0 %v852
    %1109 = vmatpush.bf16.msra.mxu0 %v848
    %1110 = vmatpush.bf16.msra.mxu0 %v844
    %1111 = vmatmul.bf16.gmra.mxu0 %v1076
    %v1112 = vpop.f32.mrf.mxu0
    %v1113 = vadd.f32 %v1083, %v1112
    %v1114 = vpop.f32.mrf.mxu0
    %1115 = vdwg.mxu0
    %1116 = vmatpush.bf16.msra.mxu0 %v873
    %1117 = vmatpush.bf16.msra.mxu0 %v869
    %1118 = vmatpush.bf16.msra.mxu0 %v865
    %1119 = vmatpush.bf16.msra.mxu0 %v861
    %1120 = vmatpush.bf16.msra.mxu0 %v857
    %1121 = vmatpush.bf16.msra.mxu0 %v853
    %1122 = vmatpush.bf16.msra.mxu0 %v849
    %1123 = vmatpush.bf16.msra.mxu0 %v845
    %1124 = vmatmul.bf16.gmra.mxu0 %v1076
    %v1125 = vpop.f32.mrf.mxu0
    %v1126 = vadd.f32 %v1084, %v1125
    %v1127 = vpop.f32.mrf.mxu0
    %1128 = vdwg.mxu0
    %1129 = vmatpush.bf16.msra.mxu0 %v874
    %1130 = vmatpush.bf16.msra.mxu0 %v870
    %1131 = vmatpush.bf16.msra.mxu0 %v866
    %1132 = vmatpush.bf16.msra.mxu0 %v862
    %1133 = vmatpush.bf16.msra.mxu0 %v858
    %1134 = vmatpush.bf16.msra.mxu0 %v854
    %1135 = vmatpush.bf16.msra.mxu0 %v850
    %1136 = vmatpush.bf16.msra.mxu0 %v846
    %1137 = vmatmul.bf16.gmra.mxu0 %v1076
    %v1138 = vpop.f32.mrf.mxu0
    %v1139 = vadd.f32 %v1085, %v1138
    %v1140 = vpop.f32.mrf.mxu0
    %1141 = vdwg.mxu0
    %v1142 = vtanh.pop %v1100
    %v1143 = vtanh.pop %v1113
    %v1144 = vtanh.pop %v1126
    %v1145 = vtanh.pop %v1139
    %v1146 = vmul.f32 %v1142, 0.5
    %v1147 = vadd.f32 %v1146, 0.5
    %v1148 = vmul.f32 %v1143, 0.5
    %v1149 = vadd.f32 %v1148, 0.5
    %v1150 = vmul.f32 %v1145, 0.5
    %v1151 = vadd.f32 %v1150, 0.5
    %v1152 = vmul.f32 %v1149, %v1069
    %v1153 = vmul.f32 %v1147, %v1144
    %v1154 = vadd.f32 %v1152, %v1153
    %v1155 = vtanh.pop %v1154
    %v1156 = vmul.f32 %v1151, %v1155
    %s1157 = scalar_lea.vmem [#allocation2], 3
    %v1158 = vld [vmem:[%s1157] ss:$8 sm:$0xf]
    %s1159 = scalar_lea.vmem [#allocation2], 67
    %v1160 = vld [vmem:[%s1159] ss:$8 sm:$0xf]
    %v1161 = vpack.c.bf16 %v1156, %v1156
    %1164 = vst [vmem:[#allocation1] ss:$9 sm:$0xff] %v1158
    %s1165 = scalar_lea.vmem [#allocation1], 1
    %1166 = vst [vmem:[%s1165] ss:$9 sm:$0xff] %v1160
    %v1167 = vld [vmem:[#allocation1] sm:$0xff]
    %v1168 = vld [vmem:[#allocation1 + $0x9] sm:$0xff]
    %v1169 = vld [vmem:[#allocation1 + $0x12] sm:$0xff]
    %v1170 = vld [vmem:[#allocation1 + $0x1b] sm:$0xff]
    %1175 = vmatpush.bf16.msra.mxu0 %v871
    %1176 = vmatpush.bf16.msra.mxu0 %v867
    %1177 = vmatpush.bf16.msra.mxu0 %v863
    %1178 = vmatpush.bf16.msra.mxu0 %v859
    %1179 = vmatpush.bf16.msra.mxu0 %v855
    %1180 = vmatpush.bf16.msra.mxu0 %v851
    %1181 = vmatpush.bf16.msra.mxu0 %v847
    %1182 = vmatpush.bf16.msra.mxu0 %v843
    %1183 = vmatmul.bf16.gmra.mxu0 %v1161
    %v1184 = vpop.f32.mrf.mxu0
    %v1185 = vadd.f32 %v1167, %v1184
    %v1186 = vpop.f32.mrf.mxu0
    %1187 = vdwg.mxu0
    %1188 = vmatpush.bf16.msra.mxu0 %v872
    %1189 = vmatpush.bf16.msra.mxu0 %v868
    %1190 = vmatpush.bf16.msra.mxu0 %v864
    %1191 = vmatpush.bf16.msra.mxu0 %v860
    %1192 = vmatpush.bf16.msra.mxu0 %v856
    %1193 = vmatpush.bf16.msra.mxu0 %v852
    %1194 = vmatpush.bf16.msra.mxu0 %v848
    %1195 = vmatpush.bf16.msra.mxu0 %v844
    %1196 = vmatmul.bf16.gmra.mxu0 %v1161
    %v1197 = vpop.f32.mrf.mxu0
    %v1198 = vadd.f32 %v1168, %v1197
    %v1199 = vpop.f32.mrf.mxu0
    %1200 = vdwg.mxu0
    %1201 = vmatpush.bf16.msra.mxu0 %v873
    %1202 = vmatpush.bf16.msra.mxu0 %v869
    %1203 = vmatpush.bf16.msra.mxu0 %v865
    %1204 = vmatpush.bf16.msra.mxu0 %v861
    %1205 = vmatpush.bf16.msra.mxu0 %v857
    %1206 = vmatpush.bf16.msra.mxu0 %v853
    %1207 = vmatpush.bf16.msra.mxu0 %v849
    %1208 = vmatpush.bf16.msra.mxu0 %v845
    %1209 = vmatmul.bf16.gmra.mxu0 %v1161
    %v1210 = vpop.f32.mrf.mxu0
    %v1211 = vadd.f32 %v1169, %v1210
    %v1212 = vpop.f32.mrf.mxu0
    %1213 = vdwg.mxu0
    %1214 = vmatpush.bf16.msra.mxu0 %v874
    %1215 = vmatpush.bf16.msra.mxu0 %v870
    %1216 = vmatpush.bf16.msra.mxu0 %v866
    %1217 = vmatpush.bf16.msra.mxu0 %v862
    %1218 = vmatpush.bf16.msra.mxu0 %v858
    %1219 = vmatpush.bf16.msra.mxu0 %v854
    %1220 = vmatpush.bf16.msra.mxu0 %v850
    %1221 = vmatpush.bf16.msra.mxu0 %v846
    %1222 = vmatmul.bf16.gmra.mxu0 %v1161
    %v1223 = vpop.f32.mrf.mxu0
    %v1224 = vadd.f32 %v1170, %v1223
    %v1225 = vpop.f32.mrf.mxu0
    %1226 = vdwg.mxu0
    %v1227 = vtanh.pop %v1185
    %v1228 = vtanh.pop %v1198
    %v1229 = vtanh.pop %v1211
    %v1230 = vtanh.pop %v1224
    %v1231 = vmul.f32 %v1227, 0.5
    %v1232 = vadd.f32 %v1231, 0.5
    %v1233 = vmul.f32 %v1228, 0.5
    %v1234 = vadd.f32 %v1233, 0.5
    %v1235 = vmul.f32 %v1230, 0.5
    %v1236 = vadd.f32 %v1235, 0.5
    %v1237 = vmul.f32 %v1234, %v1154
    %v1238 = vmul.f32 %v1232, %v1229
    %v1239 = vadd.f32 %v1237, %v1238
    %v1240 = vtanh.pop %v1239
    %v1241 = vmul.f32 %v1236, %v1240
    %s1242 = scalar_lea.vmem [#allocation2], 4
    %v1243 = vld [vmem:[%s1242] ss:$8 sm:$0xf]
    %s1244 = scalar_lea.vmem [#allocation2], 68
    %v1245 = vld [vmem:[%s1244] ss:$8 sm:$0xf]
    %v1246 = vpack.c.bf16 %v1241, %v1241
    %1249 = vst [vmem:[#allocation1] ss:$9 sm:$0xff] %v1243
    %s1250 = scalar_lea.vmem [#allocation1], 1
    %1251 = vst [vmem:[%s1250] ss:$9 sm:$0xff] %v1245
    %v1252 = vld [vmem:[#allocation1] sm:$0xff]
    %v1253 = vld [vmem:[#allocation1 + $0x9] sm:$0xff]
    %v1254 = vld [vmem:[#allocation1 + $0x12] sm:$0xff]
    %v1255 = vld [vmem:[#allocation1 + $0x1b] sm:$0xff]
    %1260 = vmatpush.bf16.msra.mxu0 %v871
    %1261 = vmatpush.bf16.msra.mxu0 %v867
    %1262 = vmatpush.bf16.msra.mxu0 %v863
    %1263 = vmatpush.bf16.msra.mxu0 %v859
    %1264 = vmatpush.bf16.msra.mxu0 %v855
    %1265 = vmatpush.bf16.msra.mxu0 %v851
    %1266 = vmatpush.bf16.msra.mxu0 %v847
    %1267 = vmatpush.bf16.msra.mxu0 %v843
    %1268 = vmatmul.bf16.gmra.mxu0 %v1246
    %v1269 = vpop.f32.mrf.mxu0
    %v1270 = vadd.f32 %v1252, %v1269
    %v1271 = vpop.f32.mrf.mxu0
    %1272 = vdwg.mxu0
    %1273 = vmatpush.bf16.msra.mxu0 %v872
    %1274 = vmatpush.bf16.msra.mxu0 %v868
    %1275 = vmatpush.bf16.msra.mxu0 %v864
    %1276 = vmatpush.bf16.msra.mxu0 %v860
    %1277 = vmatpush.bf16.msra.mxu0 %v856
    %1278 = vmatpush.bf16.msra.mxu0 %v852
    %1279 = vmatpush.bf16.msra.mxu0 %v848
    %1280 = vmatpush.bf16.msra.mxu0 %v844
    %1281 = vmatmul.bf16.gmra.mxu0 %v1246
    %v1282 = vpop.f32.mrf.mxu0
    %v1283 = vadd.f32 %v1253, %v1282
    %v1284 = vpop.f32.mrf.mxu0
    %1285 = vdwg.mxu0
    %1286 = vmatpush.bf16.msra.mxu0 %v873
    %1287 = vmatpush.bf16.msra.mxu0 %v869
    %1288 = vmatpush.bf16.msra.mxu0 %v865
    %1289 = vmatpush.bf16.msra.mxu0 %v861
    %1290 = vmatpush.bf16.msra.mxu0 %v857
    %1291 = vmatpush.bf16.msra.mxu0 %v853
    %1292 = vmatpush.bf16.msra.mxu0 %v849
    %1293 = vmatpush.bf16.msra.mxu0 %v845
    %1294 = vmatmul.bf16.gmra.mxu0 %v1246
    %v1295 = vpop.f32.mrf.mxu0
    %v1296 = vadd.f32 %v1254, %v1295
    %v1297 = vpop.f32.mrf.mxu0
    %1298 = vdwg.mxu0
    %1299 = vmatpush.bf16.msra.mxu0 %v874
    %1300 = vmatpush.bf16.msra.mxu0 %v870
    %1301 = vmatpush.bf16.msra.mxu0 %v866
    %1302 = vmatpush.bf16.msra.mxu0 %v862
    %1303 = vmatpush.bf16.msra.mxu0 %v858
    %1304 = vmatpush.bf16.msra.mxu0 %v854
    %1305 = vmatpush.bf16.msra.mxu0 %v850
    %1306 = vmatpush.bf16.msra.mxu0 %v846
    %1307 = vmatmul.bf16.gmra.mxu0 %v1246
    %v1308 = vpop.f32.mrf.mxu0
    %v1309 = vadd.f32 %v1255, %v1308
    %v1310 = vpop.f32.mrf.mxu0
    %1311 = vdwg.mxu0
    %v1312 = vtanh.pop %v1270
    %v1313 = vtanh.pop %v1283
    %v1314 = vtanh.pop %v1296
    %v1315 = vtanh.pop %v1309
    %v1316 = vmul.f32 %v1312, 0.5
    %v1317 = vadd.f32 %v1316, 0.5
    %v1318 = vmul.f32 %v1313, 0.5
    %v1319 = vadd.f32 %v1318, 0.5
    %v1320 = vmul.f32 %v1315, 0.5
    %v1321 = vadd.f32 %v1320, 0.5
    %v1322 = vmul.f32 %v1319, %v1239
    %v1323 = vmul.f32 %v1317, %v1314
    %v1324 = vadd.f32 %v1322, %v1323
    %v1325 = vtanh.pop %v1324
    %v1326 = vmul.f32 %v1321, %v1325
    %s1327 = scalar_lea.vmem [#allocation2], 5
    %v1328 = vld [vmem:[%s1327] ss:$8 sm:$0xf]
    %s1329 = scalar_lea.vmem [#allocation2], 69
    %v1330 = vld [vmem:[%s1329] ss:$8 sm:$0xf]
    %v1331 = vpack.c.bf16 %v1326, %v1326
    %1334 = vst [vmem:[#allocation1] ss:$9 sm:$0xff] %v1328
    %s1335 = scalar_lea.vmem [#allocation1], 1
    %1336 = vst [vmem:[%s1335] ss:$9 sm:$0xff] %v1330
    %v1337 = vld [vmem:[#allocation1] sm:$0xff]
    %v1338 = vld [vmem:[#allocation1 + $0x9] sm:$0xff]
    %v1339 = vld [vmem:[#allocation1 + $0x12] sm:$0xff]
    %v1340 = vld [vmem:[#allocation1 + $0x1b] sm:$0xff]
    %1345 = vmatpush.bf16.msra.mxu0 %v871
    %1346 = vmatpush.bf16.msra.mxu0 %v867
    %1347 = vmatpush.bf16.msra.mxu0 %v863
    %1348 = vmatpush.bf16.msra.mxu0 %v859
    %1349 = vmatpush.bf16.msra.mxu0 %v855
    %1350 = vmatpush.bf16.msra.mxu0 %v851
    %1351 = vmatpush.bf16.msra.mxu0 %v847
    %1352 = vmatpush.bf16.msra.mxu0 %v843
    %1353 = vmatmul.bf16.gmra.mxu0 %v1331
    %v1354 = vpop.f32.mrf.mxu0
    %v1355 = vadd.f32 %v1337, %v1354
    %v1356 = vpop.f32.mrf.mxu0
    %1357 = vdwg.mxu0
    %1358 = vmatpush.bf16.msra.mxu0 %v872
    %1359 = vmatpush.bf16.msra.mxu0 %v868
    %1360 = vmatpush.bf16.msra.mxu0 %v864
    %1361 = vmatpush.bf16.msra.mxu0 %v860
    %1362 = vmatpush.bf16.msra.mxu0 %v856
    %1363 = vmatpush.bf16.msra.mxu0 %v852
    %1364 = vmatpush.bf16.msra.mxu0 %v848
    %1365 = vmatpush.bf16.msra.mxu0 %v844
    %1366 = vmatmul.bf16.gmra.mxu0 %v1331
    %v1367 = vpop.f32.mrf.mxu0
    %v1368 = vadd.f32 %v1338, %v1367
    %v1369 = vpop.f32.mrf.mxu0
    %1370 = vdwg.mxu0
    %1371 = vmatpush.bf16.msra.mxu0 %v873
    %1372 = vmatpush.bf16.msra.mxu0 %v869
    %1373 = vmatpush.bf16.msra.mxu0 %v865
    %1374 = vmatpush.bf16.msra.mxu0 %v861
    %1375 = vmatpush.bf16.msra.mxu0 %v857
    %1376 = vmatpush.bf16.msra.mxu0 %v853
    %1377 = vmatpush.bf16.msra.mxu0 %v849
    %1378 = vmatpush.bf16.msra.mxu0 %v845
    %1379 = vmatmul.bf16.gmra.mxu0 %v1331
    %v1380 = vpop.f32.mrf.mxu0
    %v1381 = vadd.f32 %v1339, %v1380
    %v1382 = vpop.f32.mrf.mxu0
    %1383 = vdwg.mxu0
    %1384 = vmatpush.bf16.msra.mxu0 %v874
    %1385 = vmatpush.bf16.msra.mxu0 %v870
    %1386 = vmatpush.bf16.msra.mxu0 %v866
    %1387 = vmatpush.bf16.msra.mxu0 %v862
    %1388 = vmatpush.bf16.msra.mxu0 %v858
    %1389 = vmatpush.bf16.msra.mxu0 %v854
    %1390 = vmatpush.bf16.msra.mxu0 %v850
    %1391 = vmatpush.bf16.msra.mxu0 %v846
    %1392 = vmatmul.bf16.gmra.mxu0 %v1331
    %v1393 = vpop.f32.mrf.mxu0
    %v1394 = vadd.f32 %v1340, %v1393
    %v1395 = vpop.f32.mrf.mxu0
    %1396 = vdwg.mxu0
    %v1397 = vtanh.pop %v1355
    %v1398 = vtanh.pop %v1368
    %v1399 = vtanh.pop %v1381
    %v1400 = vtanh.pop %v1394
    %v1401 = vmul.f32 %v1397, 0.5
    %v1402 = vadd.f32 %v1401, 0.5
    %v1403 = vmul.f32 %v1398, 0.5
    %v1404 = vadd.f32 %v1403, 0.5
    %v1405 = vmul.f32 %v1400, 0.5
    %v1406 = vadd.f32 %v1405, 0.5
    %v1407 = vmul.f32 %v1404, %v1324
    %v1408 = vmul.f32 %v1402, %v1399
    %v1409 = vadd.f32 %v1407, %v1408
    %v1410 = vtanh.pop %v1409
    %v1411 = vmul.f32 %v1406, %v1410
    %s1412 = scalar_lea.vmem [#allocation2], 6
    %v1413 = vld [vmem:[%s1412] ss:$8 sm:$0xf]
    %s1414 = scalar_lea.vmem [#allocation2], 70
    %v1415 = vld [vmem:[%s1414] ss:$8 sm:$0xf]
    %v1416 = vpack.c.bf16 %v1411, %v1411
    %1419 = vst [vmem:[#allocation1] ss:$9 sm:$0xff] %v1413
    %s1420 = scalar_lea.vmem [#allocation1], 1
    %1421 = vst [vmem:[%s1420] ss:$9 sm:$0xff] %v1415
    %v1422 = vld [vmem:[#allocation1] sm:$0xff]
    %v1423 = vld [vmem:[#allocation1 + $0x9] sm:$0xff]
    %v1424 = vld [vmem:[#allocation1 + $0x12] sm:$0xff]
    %v1425 = vld [vmem:[#allocation1 + $0x1b] sm:$0xff]
    %1430 = vmatpush.bf16.msra.mxu0 %v871
    %1431 = vmatpush.bf16.msra.mxu0 %v867
    %1432 = vmatpush.bf16.msra.mxu0 %v863
    %1433 = vmatpush.bf16.msra.mxu0 %v859
    %1434 = vmatpush.bf16.msra.mxu0 %v855
    %1435 = vmatpush.bf16.msra.mxu0 %v851
    %1436 = vmatpush.bf16.msra.mxu0 %v847
    %1437 = vmatpush.bf16.msra.mxu0 %v843
    %1438 = vmatmul.bf16.gmra.mxu0 %v1416
    %v1439 = vpop.f32.mrf.mxu0
    %v1440 = vadd.f32 %v1422, %v1439
    %v1441 = vpop.f32.mrf.mxu0
    %1442 = vdwg.mxu0
    %1443 = vmatpush.bf16.msra.mxu0 %v872
    %1444 = vmatpush.bf16.msra.mxu0 %v868
    %1445 = vmatpush.bf16.msra.mxu0 %v864
    %1446 = vmatpush.bf16.msra.mxu0 %v860
    %1447 = vmatpush.bf16.msra.mxu0 %v856
    %1448 = vmatpush.bf16.msra.mxu0 %v852
    %1449 = vmatpush.bf16.msra.mxu0 %v848
    %1450 = vmatpush.bf16.msra.mxu0 %v844
    %1451 = vmatmul.bf16.gmra.mxu0 %v1416
    %v1452 = vpop.f32.mrf.mxu0
    %v1453 = vadd.f32 %v1423, %v1452
    %v1454 = vpop.f32.mrf.mxu0
    %1455 = vdwg.mxu0
    %1456 = vmatpush.bf16.msra.mxu0 %v873
    %1457 = vmatpush.bf16.msra.mxu0 %v869
    %1458 = vmatpush.bf16.msra.mxu0 %v865
    %1459 = vmatpush.bf16.msra.mxu0 %v861
    %1460 = vmatpush.bf16.msra.mxu0 %v857
    %1461 = vmatpush.bf16.msra.mxu0 %v853
    %1462 = vmatpush.bf16.msra.mxu0 %v849
    %1463 = vmatpush.bf16.msra.mxu0 %v845
    %1464 = vmatmul.bf16.gmra.mxu0 %v1416
    %v1465 = vpop.f32.mrf.mxu0
    %v1466 = vadd.f32 %v1424, %v1465
    %v1467 = vpop.f32.mrf.mxu0
    %1468 = vdwg.mxu0
    %1469 = vmatpush.bf16.msra.mxu0 %v874
    %1470 = vmatpush.bf16.msra.mxu0 %v870
    %1471 = vmatpush.bf16.msra.mxu0 %v866
    %1472 = vmatpush.bf16.msra.mxu0 %v862
    %1473 = vmatpush.bf16.msra.mxu0 %v858
    %1474 = vmatpush.bf16.msra.mxu0 %v854
    %1475 = vmatpush.bf16.msra.mxu0 %v850
    %1476 = vmatpush.bf16.msra.mxu0 %v846
    %1477 = vmatmul.bf16.gmra.mxu0 %v1416
    %v1478 = vpop.f32.mrf.mxu0
    %v1479 = vadd.f32 %v1425, %v1478
    %v1480 = vpop.f32.mrf.mxu0
    %1481 = vdwg.mxu0
    %v1482 = vtanh.pop %v1440
    %v1483 = vtanh.pop %v1453
    %v1484 = vtanh.pop %v1466
    %v1485 = vtanh.pop %v1479
    %v1486 = vmul.f32 %v1482, 0.5
    %v1487 = vadd.f32 %v1486, 0.5
    %v1488 = vmul.f32 %v1483, 0.5
    %v1489 = vadd.f32 %v1488, 0.5
    %v1490 = vmul.f32 %v1485, 0.5
    %v1491 = vadd.f32 %v1490, 0.5
    %v1492 = vmul.f32 %v1489, %v1409
    %v1493 = vmul.f32 %v1487, %v1484
    %v1494 = vadd.f32 %v1492, %v1493
    %v1495 = vtanh.pop %v1494
    %v1496 = vmul.f32 %v1491, %v1495
    %s1497 = scalar_lea.vmem [#allocation2], 7
    %v1498 = vld [vmem:[%s1497] ss:$8 sm:$0xf]
    %s1499 = scalar_lea.vmem [#allocation2], 71
    %v1500 = vld [vmem:[%s1499] ss:$8 sm:$0xf]
    %v1501 = vpack.c.bf16 %v1496, %v1496
    %1504 = vst [vmem:[#allocation1] ss:$9 sm:$0xff] %v1498
    %s1505 = scalar_lea.vmem [#allocation1], 1
    %1506 = vst [vmem:[%s1505] ss:$9 sm:$0xff] %v1500
    %v1507 = vld [vmem:[#allocation1] sm:$0xff]
    %v1508 = vld [vmem:[#allocation1 + $0x9] sm:$0xff]
    %v1509 = vld [vmem:[#allocation1 + $0x12] sm:$0xff]
    %v1510 = vld [vmem:[#allocation1 + $0x1b] sm:$0xff]
    %1515 = vmatpush.bf16.msra.mxu0 %v871
    %1516 = vmatpush.bf16.msra.mxu0 %v867
    %1517 = vmatpush.bf16.msra.mxu0 %v863
    %1518 = vmatpush.bf16.msra.mxu0 %v859
    %1519 = vmatpush.bf16.msra.mxu0 %v855
    %1520 = vmatpush.bf16.msra.mxu0 %v851
    %1521 = vmatpush.bf16.msra.mxu0 %v847
    %1522 = vmatpush.bf16.msra.mxu0 %v843
    %1523 = vmatmul.bf16.gmra.mxu0 %v1501
    %v1524 = vpop.f32.mrf.mxu0
    %v1525 = vadd.f32 %v1507, %v1524
    %v1526 = vpop.f32.mrf.mxu0
    %1527 = vdwg.mxu0
    %1528 = vmatpush.bf16.msra.mxu0 %v872
    %1529 = vmatpush.bf16.msra.mxu0 %v868
    %1530 = vmatpush.bf16.msra.mxu0 %v864
    %1531 = vmatpush.bf16.msra.mxu0 %v860
    %1532 = vmatpush.bf16.msra.mxu0 %v856
    %1533 = vmatpush.bf16.msra.mxu0 %v852
    %1534 = vmatpush.bf16.msra.mxu0 %v848
    %1535 = vmatpush.bf16.msra.mxu0 %v844
    %1536 = vmatmul.bf16.gmra.mxu0 %v1501
    %v1537 = vpop.f32.mrf.mxu0
    %v1538 = vadd.f32 %v1508, %v1537
    %v1539 = vpop.f32.mrf.mxu0
    %1540 = vdwg.mxu0
    %1541 = vmatpush.bf16.msra.mxu0 %v873
    %1542 = vmatpush.bf16.msra.mxu0 %v869
    %1543 = vmatpush.bf16.msra.mxu0 %v865
    %1544 = vmatpush.bf16.msra.mxu0 %v861
    %1545 = vmatpush.bf16.msra.mxu0 %v857
    %1546 = vmatpush.bf16.msra.mxu0 %v853
    %1547 = vmatpush.bf16.msra.mxu0 %v849
    %1548 = vmatpush.bf16.msra.mxu0 %v845
    %1549 = vmatmul.bf16.gmra.mxu0 %v1501
    %v1550 = vpop.f32.mrf.mxu0
    %v1551 = vadd.f32 %v1509, %v1550
    %v1552 = vpop.f32.mrf.mxu0
    %1553 = vdwg.mxu0
    %1554 = vmatpush.bf16.msra.mxu0 %v874
    %1555 = vmatpush.bf16.msra.mxu0 %v870
    %1556 = vmatpush.bf16.msra.mxu0 %v866
    %1557 = vmatpush.bf16.msra.mxu0 %v862
    %1558 = vmatpush.bf16.msra.mxu0 %v858
    %1559 = vmatpush.bf16.msra.mxu0 %v854
    %1560 = vmatpush.bf16.msra.mxu0 %v850
    %1561 = vmatpush.bf16.msra.mxu0 %v846
    %1562 = vmatmul.bf16.gmra.mxu0 %v1501
    %v1563 = vpop.f32.mrf.mxu0
    %v1564 = vadd.f32 %v1510, %v1563
    %v1565 = vpop.f32.mrf.mxu0
    %1566 = vdwg.mxu0
    %v1567 = vtanh.pop %v1525
    %v1568 = vtanh.pop %v1538
    %v1569 = vtanh.pop %v1551
    %v1570 = vtanh.pop %v1564
    %v1571 = vmul.f32 %v1567, 0.5
    %v1572 = vadd.f32 %v1571, 0.5
    %v1573 = vmul.f32 %v1568, 0.5
    %v1574 = vadd.f32 %v1573, 0.5
    %v1575 = vmul.f32 %v1570, 0.5
    %v1576 = vadd.f32 %v1575, 0.5
    %v1577 = vmul.f32 %v1574, %v1494
    %v1578 = vmul.f32 %v1572, %v1569
    %v1579 = vadd.f32 %v1577, %v1578
    %v1580 = vtanh.pop %v1579
    %v1581 = vmul.f32 %v1576, %v1580
    %s1582 = scalar_lea.vmem [#allocation2], 32
    %v1583 = vld [vmem:[%s1582] ss:$8 sm:$0xf]
    %s1584 = scalar_lea.vmem [#allocation2], 96
    %v1585 = vld [vmem:[%s1584] ss:$8 sm:$0xf]
    %v1586 = vpack.c.bf16 %v1581, %v1581
    %1589 = vst [vmem:[#allocation1] ss:$9 sm:$0xff] %v1583
    %s1590 = scalar_lea.vmem [#allocation1], 1
    %1591 = vst [vmem:[%s1590] ss:$9 sm:$0xff] %v1585
    %v1592 = vld [vmem:[#allocation1] sm:$0xff]
    %v1593 = vld [vmem:[#allocation1 + $0x9] sm:$0xff]
    %v1594 = vld [vmem:[#allocation1 + $0x12] sm:$0xff]
    %v1595 = vld [vmem:[#allocation1 + $0x1b] sm:$0xff]
    %1600 = vmatpush.bf16.msra.mxu0 %v871
    %1601 = vmatpush.bf16.msra.mxu0 %v867
    %1602 = vmatpush.bf16.msra.mxu0 %v863
    %1603 = vmatpush.bf16.msra.mxu0 %v859
    %1604 = vmatpush.bf16.msra.mxu0 %v855
    %1605 = vmatpush.bf16.msra.mxu0 %v851
    %1606 = vmatpush.bf16.msra.mxu0 %v847
    %1607 = vmatpush.bf16.msra.mxu0 %v843
    %1608 = vmatmul.bf16.gmra.mxu0 %v1586
    %v1609 = vpop.f32.mrf.mxu0
    %v1610 = vadd.f32 %v1592, %v1609
    %v1611 = vpop.f32.mrf.mxu0
    %1612 = vdwg.mxu0
    %1613 = vmatpush.bf16.msra.mxu0 %v872
    %1614 = vmatpush.bf16.msra.mxu0 %v868
    %1615 = vmatpush.bf16.msra.mxu0 %v864
    %1616 = vmatpush.bf16.msra.mxu0 %v860
    %1617 = vmatpush.bf16.msra.mxu0 %v856
    %1618 = vmatpush.bf16.msra.mxu0 %v852
    %1619 = vmatpush.bf16.msra.mxu0 %v848
    %1620 = vmatpush.bf16.msra.mxu0 %v844
    %1621 = vmatmul.bf16.gmra.mxu0 %v1586
    %v1622 = vpop.f32.mrf.mxu0
    %v1623 = vadd.f32 %v1593, %v1622
    %v1624 = vpop.f32.mrf.mxu0
    %1625 = vdwg.mxu0
    %1626 = vmatpush.bf16.msra.mxu0 %v873
    %1627 = vmatpush.bf16.msra.mxu0 %v869
    %1628 = vmatpush.bf16.msra.mxu0 %v865
    %1629 = vmatpush.bf16.msra.mxu0 %v861
    %1630 = vmatpush.bf16.msra.mxu0 %v857
    %1631 = vmatpush.bf16.msra.mxu0 %v853
    %1632 = vmatpush.bf16.msra.mxu0 %v849
    %1633 = vmatpush.bf16.msra.mxu0 %v845
    %1634 = vmatmul.bf16.gmra.mxu0 %v1586
    %v1635 = vpop.f32.mrf.mxu0
    %v1636 = vadd.f32 %v1594, %v1635
    %v1637 = vpop.f32.mrf.mxu0
    %1638 = vdwg.mxu0
    %1639 = vmatpush.bf16.msra.mxu0 %v874
    %1640 = vmatpush.bf16.msra.mxu0 %v870
    %1641 = vmatpush.bf16.msra.mxu0 %v866
    %1642 = vmatpush.bf16.msra.mxu0 %v862
    %1643 = vmatpush.bf16.msra.mxu0 %v858
    %1644 = vmatpush.bf16.msra.mxu0 %v854
    %1645 = vmatpush.bf16.msra.mxu0 %v850
    %1646 = vmatpush.bf16.msra.mxu0 %v846
    %1647 = vmatmul.bf16.gmra.mxu0 %v1586
    %v1648 = vpop.f32.mrf.mxu0
    %v1649 = vadd.f32 %v1595, %v1648
    %v1650 = vpop.f32.mrf.mxu0
    %1651 = vdwg.mxu0
    %v1652 = vtanh.pop %v1610
    %v1653 = vtanh.pop %v1623
    %v1654 = vtanh.pop %v1636
    %v1655 = vtanh.pop %v1649
    %v1656 = vmul.f32 %v1652, 0.5
    %v1657 = vadd.f32 %v1656, 0.5
    %v1658 = vmul.f32 %v1653, 0.5
    %v1659 = vadd.f32 %v1658, 0.5
    %v1660 = vmul.f32 %v1655, 0.5
    %v1661 = vadd.f32 %v1660, 0.5
    %v1662 = vmul.f32 %v1659, %v1579
    %v1663 = vmul.f32 %v1657, %v1654
    %v1664 = vadd.f32 %v1662, %v1663
    %v1665 = vtanh.pop %v1664
    %v1666 = vmul.f32 %v1661, %v1665
    %s1667 = scalar_lea.vmem [#allocation2], 33
    %v1668 = vld [vmem:[%s1667] ss:$8 sm:$0xf]
    %s1669 = scalar_lea.vmem [#allocation2], 97
    %v1670 = vld [vmem:[%s1669] ss:$8 sm:$0xf]
    %v1671 = vpack.c.bf16 %v1666, %v1666
    %1674 = vst [vmem:[#allocation1] ss:$9 sm:$0xff] %v1668
    %s1675 = scalar_lea.vmem [#allocation1], 1
    %1676 = vst [vmem:[%s1675] ss:$9 sm:$0xff] %v1670
    %v1677 = vld [vmem:[#allocation1] sm:$0xff]
    %v1678 = vld [vmem:[#allocation1 + $0x9] sm:$0xff]
    %v1679 = vld [vmem:[#allocation1 + $0x12] sm:$0xff]
    %v1680 = vld [vmem:[#allocation1 + $0x1b] sm:$0xff]
    %1685 = vmatpush.bf16.msra.mxu0 %v871
    %1686 = vmatpush.bf16.msra.mxu0 %v867
    %1687 = vmatpush.bf16.msra.mxu0 %v863
    %1688 = vmatpush.bf16.msra.mxu0 %v859
    %1689 = vmatpush.bf16.msra.mxu0 %v855
    %1690 = vmatpush.bf16.msra.mxu0 %v851
    %1691 = vmatpush.bf16.msra.mxu0 %v847
    %1692 = vmatpush.bf16.msra.mxu0 %v843
    %1693 = vmatmul.bf16.gmra.mxu0 %v1671
    %v1694 = vpop.f32.mrf.mxu0
    %v1695 = vadd.f32 %v1677, %v1694
    %v1696 = vpop.f32.mrf.mxu0
    %1697 = vdwg.mxu0
    %1698 = vmatpush.bf16.msra.mxu0 %v872
    %1699 = vmatpush.bf16.msra.mxu0 %v868
    %1700 = vmatpush.bf16.msra.mxu0 %v864
    %1701 = vmatpush.bf16.msra.mxu0 %v860
    %1702 = vmatpush.bf16.msra.mxu0 %v856
    %1703 = vmatpush.bf16.msra.mxu0 %v852
    %1704 = vmatpush.bf16.msra.mxu0 %v848
    %1705 = vmatpush.bf16.msra.mxu0 %v844
    %1706 = vmatmul.bf16.gmra.mxu0 %v1671
    %v1707 = vpop.f32.mrf.mxu0
    %v1708 = vadd.f32 %v1678, %v1707
    %v1709 = vpop.f32.mrf.mxu0
    %1710 = vdwg.mxu0
    %1711 = vmatpush.bf16.msra.mxu0 %v873
    %1712 = vmatpush.bf16.msra.mxu0 %v869
    %1713 = vmatpush.bf16.msra.mxu0 %v865
    %1714 = vmatpush.bf16.msra.mxu0 %v861
    %1715 = vmatpush.bf16.msra.mxu0 %v857
    %1716 = vmatpush.bf16.msra.mxu0 %v853
    %1717 = vmatpush.bf16.msra.mxu0 %v849
    %1718 = vmatpush.bf16.msra.mxu0 %v845
    %1719 = vmatmul.bf16.gmra.mxu0 %v1671
    %v1720 = vpop.f32.mrf.mxu0
    %v1721 = vadd.f32 %v1679, %v1720
    %v1722 = vpop.f32.mrf.mxu0
    %1723 = vdwg.mxu0
    %1724 = vmatpush.bf16.msra.mxu0 %v874
    %1725 = vmatpush.bf16.msra.mxu0 %v870
    %1726 = vmatpush.bf16.msra.mxu0 %v866
    %1727 = vmatpush.bf16.msra.mxu0 %v862
    %1728 = vmatpush.bf16.msra.mxu0 %v858
    %1729 = vmatpush.bf16.msra.mxu0 %v854
    %1730 = vmatpush.bf16.msra.mxu0 %v850
    %1731 = vmatpush.bf16.msra.mxu0 %v846
    %1732 = vmatmul.bf16.gmra.mxu0 %v1671
    %v1733 = vpop.f32.mrf.mxu0
    %v1734 = vadd.f32 %v1680, %v1733
    %v1735 = vpop.f32.mrf.mxu0
    %1736 = vdwg.mxu0
    %v1737 = vtanh.pop %v1695
    %v1738 = vtanh.pop %v1708
    %v1739 = vtanh.pop %v1721
    %v1740 = vtanh.pop %v1734
    %v1741 = vmul.f32 %v1737, 0.5
    %v1742 = vadd.f32 %v1741, 0.5
    %v1743 = vmul.f32 %v1738, 0.5
    %v1744 = vadd.f32 %v1743, 0.5
    %v1745 = vmul.f32 %v1740, 0.5
    %v1746 = vadd.f32 %v1745, 0.5
    %v1747 = vmul.f32 %v1744, %v1664
    %v1748 = vmul.f32 %v1742, %v1739
    %v1749 = vadd.f32 %v1747, %v1748
    %v1750 = vtanh.pop %v1749
    %v1751 = vmul.f32 %v1746, %v1750
    %s1752 = scalar_lea.vmem [#allocation9], 2
    %v1753 = vld [vmem:[%s1752] ss:$4 sm:$0xf]
    %s1754 = scalar_lea.vmem [#allocation9], 3
    %v1755 = vld [vmem:[%s1754] ss:$4 sm:$0xf]
    %1757 = vset.pattern.permute.xlu0 9
    %1758 = vperm.xlu0 %1757, %v616
    %v1759 = vpop.permute.xlu0 %1758
    %v1762 = vperm.slane %v1753, 0
    %v1763 = vperm.slane %v1753, 2
    %v1764 = vperm.slane %v1753, 3
    %v1768 = vmul.f32 %v1759, %v1762
    %v1769 = vmul.f32 %v1759, %v1763
    %v1770 = vmul.f32 %v1759, %v1764
    %v1772 = vperm.slane %v1755, 0
    %v1773 = vperm.slane %v1755, 2
    %v1774 = vperm.slane %v1755, 3
    %v1778 = vadd.f32 %v1768, %v1772
    %v1779 = vadd.f32 %v1769, %v1773
    %v1780 = vadd.f32 %v1770, %v1774
    %v1781 = vtanh.pop %v1778
    %v1782 = vtanh.pop %v1779
    %v1783 = vtanh.pop %v1780
    %v1784 = vmul.f32 %v1781, 0.5
    %v1785 = vadd.f32 %v1784, 0.5
    %v1786 = vmul.f32 %v1783, 0.5
    %v1787 = vadd.f32 %v1786, 0.5
    %v1788 = vmul.f32 %v1785, %v1782
    %v1789 = vtanh.pop %v1788
    %v1790 = vmul.f32 %v1787, %v1789
    %v1791 = vpack.c.bf16 %v1751, %v1751
    %v1792 = vpack.c.bf16 %v1790, %v1790
    %v1793 = vld [vmem:[#allocation10] sm:$0xf]
    %v1794 = vld [vmem:[#allocation10 + $0x4] sm:$0xf]
    %v1795 = vld [vmem:[#allocation10 + $0x8] sm:$0xf]
    %v1796 = vld [vmem:[#allocation10 + $0xc] sm:$0xf]
    %v1797 = vld [vmem:[#allocation10 + $0x10] sm:$0xf]
    %v1798 = vld [vmem:[#allocation10 + $0x14] sm:$0xf]
    %v1799 = vld [vmem:[#allocation10 + $0x18] sm:$0xf]
    %v1800 = vld [vmem:[#allocation10 + $0x1c] sm:$0xf]
    %v1801 = vld [vmem:[#allocation10 + $0x20] sm:$0xf]
    %v1802 = vld [vmem:[#allocation10 + $0x24] sm:$0xf]
    %v1803 = vld [vmem:[#allocation10 + $0x28] sm:$0xf]
    %v1804 = vld [vmem:[#allocation10 + $0x2c] sm:$0xf]
    %v1805 = vld [vmem:[#allocation10 + $0x30] sm:$0xf]
    %v1806 = vld [vmem:[#allocation10 + $0x34] sm:$0xf]
    %v1807 = vld [vmem:[#allocation10 + $0x38] sm:$0xf]
    %v1808 = vld [vmem:[#allocation10 + $0x3c] sm:$0xf]
    %v1809 = vld [vmem:[#allocation10 + $0x40] sm:$0xf]
    %v1810 = vld [vmem:[#allocation10 + $0x44] sm:$0xf]
    %v1811 = vld [vmem:[#allocation10 + $0x48] sm:$0xf]
    %v1812 = vld [vmem:[#allocation10 + $0x4c] sm:$0xf]
    %v1813 = vld [vmem:[#allocation10 + $0x50] sm:$0xf]
    %v1814 = vld [vmem:[#allocation10 + $0x54] sm:$0xf]
    %v1815 = vld [vmem:[#allocation10 + $0x58] sm:$0xf]
    %v1816 = vld [vmem:[#allocation10 + $0x5c] sm:$0xf]
    %v1817 = vld [vmem:[#allocation10 + $0x60] sm:$0xf]
    %v1818 = vld [vmem:[#allocation10 + $0x64] sm:$0xf]
    %v1819 = vld [vmem:[#allocation10 + $0x68] sm:$0xf]
    %v1820 = vld [vmem:[#allocation10 + $0x6c] sm:$0xf]
    %v1821 = vld [vmem:[#allocation10 + $0x70] sm:$0xf]
    %v1822 = vld [vmem:[#allocation10 + $0x74] sm:$0xf]
    %v1823 = vld [vmem:[#allocation10 + $0x78] sm:$0xf]
    %v1824 = vld [vmem:[#allocation10 + $0x7c] sm:$0xf]
    %v1825 = vld [vmem:[%s6] sm:$0x1]
    %v1826 = vperm.slane %v1825, 0
    %v1859 = vunpack.c.l.b16 %v1793
    %v1860 = vunpack.c.l.b16 %v1794
    %v1861 = vunpack.c.l.b16 %v1795
    %v1862 = vunpack.c.l.b16 %v1796
    %v1863 = vunpack.c.l.b16 %v1797
    %v1864 = vunpack.c.l.b16 %v1798
    %v1865 = vunpack.c.l.b16 %v1799
    %v1866 = vunpack.c.l.b16 %v1800
    %v1867 = vunpack.c.l.b16 %v1801
    %v1868 = vunpack.c.l.b16 %v1802
    %v1869 = vunpack.c.l.b16 %v1803
    %v1870 = vunpack.c.l.b16 %v1804
    %v1871 = vunpack.c.l.b16 %v1805
    %v1872 = vunpack.c.l.b16 %v1806
    %v1873 = vunpack.c.l.b16 %v1807
    %v1874 = vunpack.c.l.b16 %v1808
    %v1875 = vunpack.c.l.b16 %v1809
    %v1876 = vunpack.c.l.b16 %v1810
    %v1877 = vunpack.c.l.b16 %v1811
    %v1878 = vunpack.c.l.b16 %v1812
    %v1879 = vunpack.c.l.b16 %v1813
    %v1880 = vunpack.c.l.b16 %v1814
    %v1881 = vunpack.c.l.b16 %v1815
    %v1882 = vunpack.c.l.b16 %v1816
    %v1883 = vunpack.c.l.b16 %v1817
    %v1884 = vunpack.c.l.b16 %v1818
    %v1885 = vunpack.c.l.b16 %v1819
    %v1886 = vunpack.c.l.b16 %v1820
    %v1887 = vunpack.c.l.b16 %v1821
    %v1888 = vunpack.c.l.b16 %v1822
    %v1889 = vunpack.c.l.b16 %v1823
    %v1890 = vunpack.c.l.b16 %v1824
    %v1891 = vpack.c.b16 %v1860, %v1859
    %v1892 = vpack.c.b16 %v1862, %v1861
    %v1893 = vpack.c.b16 %v1864, %v1863
    %v1894 = vpack.c.b16 %v1866, %v1865
    %v1895 = vpack.c.b16 %v1868, %v1867
    %v1896 = vpack.c.b16 %v1870, %v1869
    %v1897 = vpack.c.b16 %v1872, %v1871
    %v1898 = vpack.c.b16 %v1874, %v1873
    %v1899 = vpack.c.b16 %v1876, %v1875
    %v1900 = vpack.c.b16 %v1878, %v1877
    %v1901 = vpack.c.b16 %v1880, %v1879
    %v1902 = vpack.c.b16 %v1882, %v1881
    %v1903 = vpack.c.b16 %v1884, %v1883
    %v1904 = vpack.c.b16 %v1886, %v1885
    %v1905 = vpack.c.b16 %v1888, %v1887
    %v1906 = vpack.c.b16 %v1890, %v1889
    %1923 = vmatpush.bf16.msra.mxu0 %v1898
    %1924 = vmatpush.bf16.msra.mxu0 %v1897
    %1925 = vmatpush.bf16.msra.mxu0 %v1896
    %1926 = vmatpush.bf16.msra.mxu0 %v1895
    %1927 = vmatpush.bf16.msra.mxu0 %v1894
    %1928 = vmatpush.bf16.msra.mxu0 %v1893
    %1929 = vmatpush.bf16.msra.mxu0 %v1892
    %1930 = vmatpush.bf16.msra.mxu0 %v1891
    %1931 = vmatmul.bf16.gmra.mxu0 %v1791
    %v1932 = vpop.f32.mrf.mxu0
    %v1933 = vadd.f32 %v1826, %v1932
    %v1934 = vpop.f32.mrf.mxu0
    %1935 = vdwg.mxu0
    %1936 = vmatpush.bf16.msra.mxu0 %v1906
    %1937 = vmatpush.bf16.msra.mxu0 %v1905
    %1938 = vmatpush.bf16.msra.mxu0 %v1904
    %1939 = vmatpush.bf16.msra.mxu0 %v1903
    %1940 = vmatpush.bf16.msra.mxu0 %v1902
    %1941 = vmatpush.bf16.msra.mxu0 %v1901
    %1942 = vmatpush.bf16.msra.mxu0 %v1900
    %1943 = vmatpush.bf16.msra.mxu0 %v1899
    %1944 = vmatmul.bf16.gmra.mxu0 %v1792
    %v1945 = vpop.f32.mrf.mxu0
    %v1946 = vadd.f32 %v1933, %v1945
    %v1947 = vpop.f32.mrf.mxu0
    %1948 = vdwg.mxu0
    %v1949 = vmax.f32 %v1946, 0.0
    %v1950 = vld [vmem:[%s6 + $0x1] sm:$0x1]
    %v1951 = vperm.slane %v1950, 0
    %v1952 = vmul.f32 %v1949, %v1951
    %vm1953 = vcmask 1041408
    %v1954 = vsel %vm1953, %v1952, 0.0
    %1955 = vadd.xlane.f32.xlu0 %v1954
    %v1956 = vpop.xlane.xlu0 %1955
    %s1957 = sld [smem:[#allocation3 + $0x4]]
    %v1958 = vstv %s1957
    %v1959 = vadd.f32 %v1956, %v1958
    %v1960 = vxor.u32 %v1959, 2147483648
    %v1961 = vmul.f32 %v1960, 1.442695
    %v1962 = vpow.pop %v1961
    %v1963 = vadd.f32 %v1962, 1.0
    %v1964 = vrcp.pop %v1963
    %v1965 = vmul.f32 %v1963, %v1964
    %v1966 = vsub.f32 1.0, %v1965
    %v1967 = vmul.f32 %v1964, %v1966
    %v1968 = vadd.f32 %v1964, %v1967
    %vm1969 = vweird.f32 %v1963
    %vm1970 = vweird.f32 %v1964
    %vm1971 = vmor %vm1969, %vm1970
    %v1972 = vsel %vm1971, %v1964, %v1968
    %v1973 = vand.u32 2147483647, %v1963
    %vm1974 = vcmp.eq.f32.partialorder %v1973, 8.507059e+37
    %v1975 = vand.u32 %v1963, 2147483648
    %v1976 = vor.u32 1.1754944e-38, %v1975
    %v1977 = vsel %vm1974, %v1976, %v1972
    %v1978 = vmul.f32 1.0, %v1977
    %vm1979 = vcmask 1024
    %1980 = vst.msk [vmem:[%s7] sm:$0x3] %vm1979, %v1978
    // Predicated region
    $region50: #{ppi_forward.1} parent=1 // pred_check
      _
    $region51: #{ppi_forward.1} parent=1 // pred_check_branch
      %1982 = sbr.rel (0) target = $region53
    $region52: #{ppi_forward.1} parent=1 // pred_region
      _
    $region53: #{ppi_forward.1} parent=1 // pred_fallthru
      _
    // Predicated region
    $region54: #{ppi_forward.1} parent=1 // pred_check
      _
    $region55: #{ppi_forward.1} parent=1 // pred_check_branch
      %1984 = sbr.rel (0) target = $region57
    $region56: #{ppi_forward.1} parent=1 // pred_region
      _
    $region57: #{ppi_forward.1} parent=1 // pred_fallthru
      _
    %1985 = vsyncpa [#allocation4], 1
    %1986 = vsyncpa [#allocation8], 1
    %1987 = vsyncpa [#allocation11], 1
    %1988 = vsyncpa [#allocation5], 1

</llo_original>
